<compile_context>
chip_gen: v7x
topology: tpu7x:2x2x1
jax: 0.10.0
libtpu: 0.0.40
codegen_flags: <defaults>
</compile_context>

<pallas_src>
import jax
import jax.numpy as jnp
from jax.experimental import pallas as pl
from jax.experimental.pallas import tpu as pltpu

HIDDEN = 200
OUT = 10
H_PAD = 256   # hidden padded to lane multiple
O_PAD = 128   # output padded to one full vreg lane width (keep >=128: unmasked vst)


def _round_up(n, m):
    return ((n + m - 1) // m) * m


def _pad2(a, rows, cols):
    r, c = a.shape
    return jnp.pad(a, ((0, rows - r), (0, cols - c)))


def _choose_tb(B, tb_max, min_steps=4):
    """Batch tile: cap at actual batch for small B; keep >= min_steps grid steps
    for large B so v7x megacore can shard the batch axis and the pipeline has
    something to overlap."""
    tb_max = max(16, (tb_max // 16) * 16)
    if B <= tb_max:
        return _round_up(B, 16)           # 16 = bf16 sublane pack
    tb = _round_up(pl.cdiv(B, min_steps), 128)
    return max(16, min(tb_max, tb))


def _vmem_budget_bytes(tb, D):
    """Rough VMEM working-set estimate (double-buffered I/O + resident weights +
    intermediates), with headroom; clamped so it is safe on v5e/v6e/v7x."""
    x_tiles = 2 * tb * D * 4                      # f32 input, double-buffered
    x_bf16 = tb * D * 2                           # in-kernel bf16 copy of x
    out_tiles = 2 * tb * O_PAD * 2                # bf16 output, double-buffered
    weights = (D * H_PAD + H_PAD * H_PAD + H_PAD * O_PAD) * 2 + 3 * H_PAD * 4
    acts = 2 * tb * H_PAD * (4 + 2)               # h1/h2 in f32 + bf16 casts
    est = x_tiles + x_bf16 + out_tiles + weights + acts
    return int(min(max(est * 1.25 + (2 << 20), 32 << 20), 56 << 20))


def _twonn_kernel(x_ref, w1_ref, b1_ref, w2_ref, b2_ref, w3_ref, b3_ref, o_ref):
    # x: [TB, D] f32 (per-tile), weights bf16 (VMEM-resident), biases f32.
    x = x_ref[...].astype(jnp.bfloat16)            # cast in-kernel (no HBM pre-pass)

    # Layer 1: bf16 MXU matmul, f32 accumulate; bias + ReLU in f32 (VPU).
    h1 = jnp.dot(x, w1_ref[...], preferred_element_type=jnp.float32)      # [TB, 256]
    h1 = jnp.maximum(h1 + b1_ref[...], 0.0)

    # Layer 2
    h2 = jnp.dot(h1.astype(jnp.bfloat16), w2_ref[...],
                 preferred_element_type=jnp.float32)                      # [TB, 256]
    h2 = jnp.maximum(h2 + b2_ref[...], 0.0)

    # Layer 3 (lane-dense padded output, 128 wide, bf16 writeback)
    out = jnp.dot(h2.astype(jnp.bfloat16), w3_ref[...],
                  preferred_element_type=jnp.float32)                     # [TB, 128]
    o_ref[...] = (out + b3_ref[...]).astype(o_ref.dtype)


def twonn_forward(x_nchw, params, *, tb_max=1024):
    """params: dict with w1[D,200], b1[1,200], w2[200,200], b2[1,200], w3[200,10], b3[1,10]."""
    B = x_nchw.shape[0]
    D = x_nchw.shape[1] * x_nchw.shape[-2] * x_nchw.shape[-1]

    # Flatten (same as torch .view). No pad, no dtype pre-pass: f32 goes straight in.
    x = x_nchw.reshape(B, D)
    if x.dtype != jnp.float32:
        x = x.astype(jnp.float32)

    # Zero-padded (hidden/output lanes only), pre-transposed ([in, out]) bf16 weights;
    # f32 biases. D is NOT padded (minimal K is fine for the MXU and saves x traffic).
    w1 = _pad2(params["w1"], D, H_PAD).astype(jnp.bfloat16)
    b1 = _pad2(params["b1"], 1, H_PAD).astype(jnp.float32)
    w2 = _pad2(params["w2"], H_PAD, H_PAD).astype(jnp.bfloat16)
    b2 = _pad2(params["b2"], 1, H_PAD).astype(jnp.float32)
    w3 = _pad2(params["w3"], H_PAD, O_PAD).astype(jnp.bfloat16)
    b3 = _pad2(params["b3"], 1, O_PAD).astype(jnp.float32)

    tb = _choose_tb(B, tb_max)
    grid = (pl.cdiv(B, tb),)               # ragged last block: reads unspecified rows,
                                           # writes masked — rows are independent.

    # Weights/biases: constant block index -> VMEM-resident, single DMA.
    resident = lambda shape: pl.BlockSpec(shape, lambda i: (0, 0))

    flops = 2 * B * (D * HIDDEN + HIDDEN * HIDDEN + HIDDEN * OUT)
    bytes_accessed = (B * D * 4                                   # x (f32 in)
                      + (D * H_PAD + H_PAD * H_PAD + H_PAD * O_PAD) * 2
                      + 3 * H_PAD * 4                             # biases (f32)
                      + B * O_PAD * 2)                            # out (bf16)

    out = pl.pallas_call(
        _twonn_kernel,
        out_shape=jax.ShapeDtypeStruct((B, O_PAD), jnp.bfloat16),
        grid=grid,
        in_specs=[
            pl.BlockSpec((tb, D), lambda i: (i, 0)),   # x: tiled over batch
            resident(w1.shape), resident(b1.shape),
            resident(w2.shape), resident(b2.shape),
            resident(w3.shape), resident(b3.shape),
        ],
        out_specs=pl.BlockSpec((tb, O_PAD), lambda i: (i, 0)),
        compiler_params=pltpu.CompilerParams(
            dimension_semantics=("parallel",),          # megacore sharding on v7x
            vmem_limit_bytes=_vmem_budget_bytes(tb, D),
        ),
        cost_estimate=pl.CostEstimate(flops=flops, transcendentals=0,
                                      bytes_accessed=bytes_accessed),
    )(x, w1, b1, w2, b2, w3, b3)

    # Slice real logits and restore the module's f32 output dtype (tiny [B,10] op).
    return out[:B, :OUT].astype(jnp.float32)


def init_params(key, input_size):
    """Deterministic init mimicking nn.Linear default (uniform +/- 1/sqrt(fan_in)).
    Weights stored as [in, out] (transposed relative to torch's [out, in])."""
    def linear(k, fan_in, fan_out):
        kw, kb = jax.random.split(k)
        bound = 1.0 / jnp.sqrt(fan_in)
        w = jax.random.uniform(kw, (fan_in, fan_out), jnp.float32, -bound, bound)
        b = jax.random.uniform(kb, (1, fan_out), jnp.float32, -bound, bound)
        return w, b

    k1, k2, k3 = jax.random.split(key, 3)
    w1, b1 = linear(k1, input_size, HIDDEN)
    w2, b2 = linear(k2, HIDDEN, HIDDEN)
    w3, b3 = linear(k3, HIDDEN, OUT)
    return {"w1": w1, "b1": b1, "w2": w2, "b2": b2, "w3": w3, "b3": b3}


def _flatten(x_nchw):
    B = x_nchw.shape[0]
    D = x_nchw.shape[1] * x_nchw.shape[-2] * x_nchw.shape[-1]
    return x_nchw.reshape(B, D).astype(jnp.float32)


def _reference_f32(x_nchw, p):
    """Pure f32 reference of the original PyTorch forward."""
    x = _flatten(x_nchw)
    h1 = jax.nn.relu(x @ p["w1"] + p["b1"])
    h2 = jax.nn.relu(h1 @ p["w2"] + p["b2"])
    return h2 @ p["w3"] + p["b3"]


def _reference_bf16(x_nchw, p):
    """Reference mirroring the kernel's bf16-in / f32-accumulate / bf16-out numerics."""
    x = _flatten(x_nchw).astype(jnp.bfloat16)
    w1 = p["w1"].astype(jnp.bfloat16)
    w2 = p["w2"].astype(jnp.bfloat16)
    w3 = p["w3"].astype(jnp.bfloat16)
    h1 = jnp.maximum(jnp.dot(x, w1, preferred_element_type=jnp.float32) + p["b1"], 0.0)
    h2 = jnp.maximum(jnp.dot(h1.astype(jnp.bfloat16), w2,
                             preferred_element_type=jnp.float32) + p["b2"], 0.0)
    y = jnp.dot(h2.astype(jnp.bfloat16), w3,
                preferred_element_type=jnp.float32) + p["b3"]
    return y.astype(jnp.bfloat16).astype(jnp.float32)   # match bf16 writeback


if __name__ == "__main__":
    key = jax.random.PRNGKey(0)
    k_x, k_p = jax.random.split(key)

    # Small NCHW input consistent with the flatten in forward(): D = 4*16*16 = 1024.
    B, C, H, W = 2, 4, 16, 16
    x = jax.random.normal(k_x, (B, C, H, W), jnp.float32)
    params = init_params(k_p, C * H * W)

    out = twonn_forward(x, params)
    out = jax.block_until_ready(out)
    assert out.shape == (B, OUT), out.shape

    # Tight check vs a reference with matching bf16/f32 numerics.
    ref_bf16 = _reference_bf16(x, params)
    assert jnp.allclose(out, ref_bf16, atol=1e-2, rtol=1e-2), "mismatch vs bf16 reference"

    # Loose semantic check vs the pure-f32 PyTorch-equivalent forward.
    ref_f32 = _reference_f32(x, params)
    assert jnp.allclose(out, ref_f32, atol=6e-2, rtol=6e-2), "mismatch vs f32 reference"

    # Second, larger batch to exercise the multi-step ragged grid path.
    B2 = 300
    x2 = jax.random.normal(jax.random.PRNGKey(1), (B2, C, H, W), jnp.float32)
    out2 = jax.block_until_ready(twonn_forward(x2, params, tb_max=128))  # grid = 3, ragged
    assert out2.shape == (B2, OUT), out2.shape
    assert jnp.allclose(out2, _reference_bf16(x2, params), atol=1e-2, rtol=1e-2), \
        "mismatch vs bf16 reference (ragged batch)"

    print("KERNEL_OK")
</pallas_src>

<mosaic_0001>
module attributes {stable_mosaic.version = 11 : i64} {
  func.func @_twonn_kernel(%arg0: i32, %arg1: memref<16x1024xf32, #tpu.memory_space<vmem>>, %arg2: memref<1024x256xbf16, #tpu.memory_space<vmem>>, %arg3: memref<1x256xf32, #tpu.memory_space<vmem>>, %arg4: memref<256x256xbf16, #tpu.memory_space<vmem>>, %arg5: memref<1x256xf32, #tpu.memory_space<vmem>>, %arg6: memref<256x128xbf16, #tpu.memory_space<vmem>>, %arg7: memref<1x128xf32, #tpu.memory_space<vmem>>, %arg8: memref<16x128xbf16, #tpu.memory_space<vmem>>) attributes {dimension_semantics = [#tpu.dimension_semantics<parallel>], iteration_bounds = array<i64: 1>, scalar_prefetch = 0 : i64, scratch_operands = 0 : i64, tpu.core_type = #tpu.core_type<tc>, window_params = [{transform_indices = @transform_0, window_bounds = array<i64: 16, 1024>}, {pipeline_mode = #tpu.pipeline_mode<synchronous>, transform_indices = @transform_1, window_bounds = array<i64: 1024, 256>}, {pipeline_mode = #tpu.pipeline_mode<synchronous>, transform_indices = @transform_2, window_bounds = array<i64: 1, 256>}, {pipeline_mode = #tpu.pipeline_mode<synchronous>, transform_indices = @transform_3, window_bounds = array<i64: 256, 256>}, {pipeline_mode = #tpu.pipeline_mode<synchronous>, transform_indices = @transform_4, window_bounds = array<i64: 1, 256>}, {pipeline_mode = #tpu.pipeline_mode<synchronous>, transform_indices = @transform_5, window_bounds = array<i64: 256, 128>}, {pipeline_mode = #tpu.pipeline_mode<synchronous>, transform_indices = @transform_6, window_bounds = array<i64: 1, 128>}, {transform_indices = @transform_7, window_bounds = array<i64: 16, 128>}]} {
    %c0 = arith.constant 0 : index
    %c0_0 = arith.constant 0 : index
    %0 = vector.load %arg1[%c0, %c0_0] : memref<16x1024xf32, #tpu.memory_space<vmem>>, vector<16x1024xf32>
    %1 = arith.truncf %0 : vector<16x1024xf32> to vector<16x1024xbf16>
    %c0_1 = arith.constant 0 : index
    %c0_2 = arith.constant 0 : index
    %2 = vector.load %arg2[%c0_1, %c0_2] : memref<1024x256xbf16, #tpu.memory_space<vmem>>, vector<1024x256xbf16>
    %cst = arith.constant dense<0.000000e+00> : vector<16x256xf32>
    %3 = tpu.matmul %1, %2, %cst {dimension_numbers = #tpu.dot_dimension_numbers<[1], [0], [0], [1], [0, 0, 1, 1], [], []>} : vector<16x1024xbf16>, vector<1024x256xbf16>, vector<16x256xf32> -> vector<16x256xf32>
    %c0_3 = arith.constant 0 : index
    %c0_4 = arith.constant 0 : index
    %4 = vector.load %arg3[%c0_3, %c0_4] : memref<1x256xf32, #tpu.memory_space<vmem>>, vector<1x256xf32>
    %5 = vector.broadcast %4 : vector<1x256xf32> to vector<16x256xf32>
    %6 = arith.addf %3, %5 : vector<16x256xf32>
    %cst_5 = arith.constant 0.000000e+00 : f32
    %7 = vector.broadcast %cst_5 : f32 to vector<16x256xf32>
    %8 = arith.maximumf %6, %7 : vector<16x256xf32>
    %9 = arith.truncf %8 : vector<16x256xf32> to vector<16x256xbf16>
    %c0_6 = arith.constant 0 : index
    %c0_7 = arith.constant 0 : index
    %10 = vector.load %arg4[%c0_6, %c0_7] : memref<256x256xbf16, #tpu.memory_space<vmem>>, vector<256x256xbf16>
    %cst_8 = arith.constant dense<0.000000e+00> : vector<16x256xf32>
    %11 = tpu.matmul %9, %10, %cst_8 {dimension_numbers = #tpu.dot_dimension_numbers<[1], [0], [0], [1], [0, 0, 1, 1], [], []>} : vector<16x256xbf16>, vector<256x256xbf16>, vector<16x256xf32> -> vector<16x256xf32>
    %c0_9 = arith.constant 0 : index
    %c0_10 = arith.constant 0 : index
    %12 = vector.load %arg5[%c0_9, %c0_10] : memref<1x256xf32, #tpu.memory_space<vmem>>, vector<1x256xf32>
    %13 = vector.broadcast %12 : vector<1x256xf32> to vector<16x256xf32>
    %14 = arith.addf %11, %13 : vector<16x256xf32>
    %cst_11 = arith.constant 0.000000e+00 : f32
    %15 = vector.broadcast %cst_11 : f32 to vector<16x256xf32>
    %16 = arith.maximumf %14, %15 : vector<16x256xf32>
    %17 = arith.truncf %16 : vector<16x256xf32> to vector<16x256xbf16>
    %c0_12 = arith.constant 0 : index
    %c0_13 = arith.constant 0 : index
    %18 = vector.load %arg6[%c0_12, %c0_13] : memref<256x128xbf16, #tpu.memory_space<vmem>>, vector<256x128xbf16>
    %cst_14 = arith.constant dense<0.000000e+00> : vector<16x128xf32>
    %19 = tpu.matmul %17, %18, %cst_14 {dimension_numbers = #tpu.dot_dimension_numbers<[1], [0], [0], [1], [0, 0, 1, 1], [], []>} : vector<16x256xbf16>, vector<256x128xbf16>, vector<16x128xf32> -> vector<16x128xf32>
    %c0_15 = arith.constant 0 : index
    %c0_16 = arith.constant 0 : index
    %20 = vector.load %arg7[%c0_15, %c0_16] : memref<1x128xf32, #tpu.memory_space<vmem>>, vector<1x128xf32>
    %21 = vector.broadcast %20 : vector<1x128xf32> to vector<16x128xf32>
    %22 = arith.addf %19, %21 : vector<16x128xf32>
    %23 = arith.truncf %22 : vector<16x128xf32> to vector<16x128xbf16>
    %c0_17 = arith.constant 0 : index
    %c0_18 = arith.constant 0 : index
    %24 = vector.load %arg8[%c0_17, %c0_18] : memref<16x128xbf16, #tpu.memory_space<vmem>>, vector<16x128xbf16>
    tpu.vector_store %arg8[%c0_17, %c0_18], %23 {strides = array<i32>} : memref<16x128xbf16, #tpu.memory_space<vmem>>, vector<16x128xbf16>,
    return
  }
  func.func @transform_0(%arg0: i32) -> (i32, i32) {
    %c0_i32 = arith.constant 0 : i32
    %c0_i32_0 = arith.constant 0 : i32
    return %arg0, %c0_i32 : i32, i32
  }
  func.func @transform_1(%arg0: i32) -> (i32, i32) {
    %c0_i32 = arith.constant 0 : i32
    %c0_i32_0 = arith.constant 0 : i32
    %c0_i32_1 = arith.constant 0 : i32
    return %c0_i32, %c0_i32_0 : i32, i32
  }
  func.func @transform_2(%arg0: i32) -> (i32, i32) {
    %c0_i32 = arith.constant 0 : i32
    %c0_i32_0 = arith.constant 0 : i32
    %c0_i32_1 = arith.constant 0 : i32
    return %c0_i32, %c0_i32_0 : i32, i32
  }
  func.func @transform_3(%arg0: i32) -> (i32, i32) {
    %c0_i32 = arith.constant 0 : i32
    %c0_i32_0 = arith.constant 0 : i32
    %c0_i32_1 = arith.constant 0 : i32
    return %c0_i32, %c0_i32_0 : i32, i32
  }
  func.func @transform_4(%arg0: i32) -> (i32, i32) {
    %c0_i32 = arith.constant 0 : i32
    %c0_i32_0 = arith.constant 0 : i32
    %c0_i32_1 = arith.constant 0 : i32
    return %c0_i32, %c0_i32_0 : i32, i32
  }
  func.func @transform_5(%arg0: i32) -> (i32, i32) {
    %c0_i32 = arith.constant 0 : i32
    %c0_i32_0 = arith.constant 0 : i32
    %c0_i32_1 = arith.constant 0 : i32
    return %c0_i32, %c0_i32_0 : i32, i32
  }
  func.func @transform_6(%arg0: i32) -> (i32, i32) {
    %c0_i32 = arith.constant 0 : i32
    %c0_i32_0 = arith.constant 0 : i32
    %c0_i32_1 = arith.constant 0 : i32
    return %c0_i32, %c0_i32_0 : i32, i32
  }
  func.func @transform_7(%arg0: i32) -> (i32, i32) {
    %c0_i32 = arith.constant 0 : i32
    %c0_i32_0 = arith.constant 0 : i32
    return %arg0, %c0_i32 : i32, i32
  }
}

</mosaic_0001>

<llo_original>
// kernel: tpu_custom_call.1
$region0: #{tpu_custom_call.1}
  #allocation0 [shape = 'u32[]', space=smem, size = 0x4, offset = 0x4, fixed_abs, tag = 'smem constant byte address 0x4 - core index']
  #allocation1 [shape = 'u32[144,128]{1,0:T(1,128)}', space=vmem, size = 0x12000, scoped, tag = 'internal scratch']
  %s0 = inlined_call_operand.hbm [shape: f32[2,1024], index: 0, kind: input, shape index: {}]
  %s1 = inlined_call_operand.hbm [shape: bf16[1024,256], index: 1, kind: input, shape index: {}]
  %s2 = inlined_call_operand.vmem [shape: f32[1,256], index: 2, kind: input, shape index: {}]
  %s3 = inlined_call_operand.hbm [shape: bf16[256,256], index: 3, kind: input, shape index: {}]
  %s4 = inlined_call_operand.vmem [shape: f32[1,256], index: 4, kind: input, shape index: {}]
  %s5 = inlined_call_operand.hbm [shape: bf16[256,128], index: 5, kind: input, shape index: {}]
  %s6 = inlined_call_operand.vmem [shape: f32[1,128], index: 6, kind: input, shape index: {}]
  %s7 = inlined_call_operand.hbm [shape: bf16[2,128], index: 7, kind: output, shape index: {}]
  %s8 = sld [smem:[#allocation0]]
  $region54: #{tpu_custom_call.1} parent=0
    _
  %s10 = ssub.s32 1, %s8
  %s11 = scalar_select 0, %s10, %s8
  $region1: #{tpu_custom_call.1} parent=0
    #allocation2 [shape = 'u8[65536]{0}', space=vmem, size = 0x10000, scoped, tag = 'input window, operand 0, single buffered']
    #allocation3 [shape = 's32[1]{0}', space=sflag, size = 0x4, scoped, tag = 'scoped memory for tpu_custom_call.1']
    #allocation4 [shape = 's32[1]{0}', space=sflag, size = 0x4, scoped, tag = 'scoped memory for tpu_custom_call.1']
    #allocation5 [shape = 'u8[524288]{0}', space=vmem, size = 0x80000, scoped, tag = 'input window, operand 1, single buffered']
    #allocation6 [shape = 's32[1]{0}', space=sflag, size = 0x4, scoped, tag = 'scoped memory for tpu_custom_call.1']
    #allocation7 [shape = 'u8[131072]{0}', space=vmem, size = 0x20000, scoped, tag = 'input window, operand 3, single buffered']
    #allocation8 [shape = 'u8[65536]{0}', space=vmem, size = 0x10000, scoped, tag = 'input window, operand 5, single buffered']
    #allocation9 [shape = 's32[1]{0}', space=sflag, size = 0x4, scoped, tag = 'scoped memory for tpu_custom_call.1']
    #allocation10 [shape = 'u8[4096]{0}', space=vmem, size = 0x1000, scoped, tag = 'output window, operand 0, single buffered']
    %12 = vsyncpa [#allocation3], 0
    %13 = vsyncpa [#allocation6], 0
    %14 = vsyncpa [#allocation9], 0
    %15 = vsyncpa [#allocation4], 0
    // Predicated region
    $region2: #{tpu_custom_call.1} parent=1 // pred_check
      _
    $region3: #{tpu_custom_call.1} parent=1 // pred_check_branch
      %17 = sbr.rel (0) target = $region5
    $region4: #{tpu_custom_call.1} parent=1 // pred_region
      %s19 = ssub.s32 2048, 256
      %20 = vsyncadd [#allocation3], %s19
      %s21 = sshll.u32 [#allocation2], 4
      %s22 = int_to_ptr.vmem [resolvable:$true] %s21
      %27 = dma.hbm_to_vmem [thread:$0]  %s0, 256, %s22, [#allocation3], 256, 256, 16
    $region5: #{tpu_custom_call.1} parent=1 // pred_fallthru
      _
    // Predicated region
    $region6: #{tpu_custom_call.1} parent=1 // pred_check
      _
    $region7: #{tpu_custom_call.1} parent=1 // pred_check_branch
      %29 = sbr.rel (0) target = $region9
    $region8: #{tpu_custom_call.1} parent=1 // pred_region
      %s31 = ssub.s32 16384, 16384
      %32 = vsyncadd [#allocation6], %s31
      %s33 = sshll.u32 [#allocation5], 4
      %s34 = int_to_ptr.vmem [resolvable:$true] %s33
      %39 = dma.hbm_to_vmem [thread:$0]  %s1, 16384, %s34, [#allocation6], 128, 128, 8
    $region9: #{tpu_custom_call.1} parent=1 // pred_fallthru
      _
    // Predicated region
    $region10: #{tpu_custom_call.1} parent=1 // pred_check
      _
    $region11: #{tpu_custom_call.1} parent=1 // pred_check_branch
      %41 = sbr.rel (0) target = $region13
    $region12: #{tpu_custom_call.1} parent=1 // pred_region
      _
    $region13: #{tpu_custom_call.1} parent=1 // pred_fallthru
      _
    // Predicated region
    $region14: #{tpu_custom_call.1} parent=1 // pred_check
      _
    $region15: #{tpu_custom_call.1} parent=1 // pred_check_branch
      %43 = sbr.rel (0) target = $region17
    $region16: #{tpu_custom_call.1} parent=1 // pred_region
      %s45 = ssub.s32 4096, 4096
      %46 = vsyncadd [#allocation6], %s45
      %s47 = sshll.u32 [#allocation7], 4
      %s48 = int_to_ptr.vmem [resolvable:$true] %s47
      %53 = dma.hbm_to_vmem [thread:$0]  %s3, 4096, %s48, [#allocation6], 128, 128, 8
    $region17: #{tpu_custom_call.1} parent=1 // pred_fallthru
      _
    // Predicated region
    $region18: #{tpu_custom_call.1} parent=1 // pred_check
      _
    $region19: #{tpu_custom_call.1} parent=1 // pred_check_branch
      %55 = sbr.rel (0) target = $region21
    $region20: #{tpu_custom_call.1} parent=1 // pred_region
      _
    $region21: #{tpu_custom_call.1} parent=1 // pred_fallthru
      _
    // Predicated region
    $region22: #{tpu_custom_call.1} parent=1 // pred_check
      _
    $region23: #{tpu_custom_call.1} parent=1 // pred_check_branch
      %57 = sbr.rel (0) target = $region25
    $region24: #{tpu_custom_call.1} parent=1 // pred_region
      %s59 = ssub.s32 2048, 2048
      %60 = vsyncadd [#allocation9], %s59
      %s61 = sshll.u32 [#allocation8], 4
      %s62 = int_to_ptr.vmem [resolvable:$true] %s61
      %67 = dma.hbm_to_vmem [thread:$0]  %s5, 2048, %s62, [#allocation9], 64, 64, 4
    $region25: #{tpu_custom_call.1} parent=1 // pred_fallthru
      _
    // Predicated region
    $region26: #{tpu_custom_call.1} parent=1 // pred_check
      _
    $region27: #{tpu_custom_call.1} parent=1 // pred_check_branch
      %69 = sbr.rel (0) target = $region29
    $region28: #{tpu_custom_call.1} parent=1 // pred_region
      _
    $region29: #{tpu_custom_call.1} parent=1 // pred_fallthru
      _
    // Predicated region
    $region30: #{tpu_custom_call.1} parent=1 // pred_check
      _
    $region31: #{tpu_custom_call.1} parent=1 // pred_check_branch
      %71 = sbr.rel (0) target = $region33
    $region32: #{tpu_custom_call.1} parent=1 // pred_region
      %72 = dma.done [#allocation3], 2048
    $region33: #{tpu_custom_call.1} parent=1 // pred_fallthru
      _
    // Predicated region
    $region34: #{tpu_custom_call.1} parent=1 // pred_check
      _
    $region35: #{tpu_custom_call.1} parent=1 // pred_check_branch
      %74 = sbr.rel (0) target = $region37
    $region36: #{tpu_custom_call.1} parent=1 // pred_region
      %75 = dma.done [#allocation6], 16384
    $region37: #{tpu_custom_call.1} parent=1 // pred_fallthru
      _
    // Predicated region
    $region38: #{tpu_custom_call.1} parent=1 // pred_check
      _
    $region39: #{tpu_custom_call.1} parent=1 // pred_check_branch
      %77 = sbr.rel (0) target = $region41
    $region40: #{tpu_custom_call.1} parent=1 // pred_region
      %78 = dma.done [#allocation6], 4096
    $region41: #{tpu_custom_call.1} parent=1 // pred_fallthru
      _
    // Predicated region
    $region42: #{tpu_custom_call.1} parent=1 // pred_check
      _
    $region43: #{tpu_custom_call.1} parent=1 // pred_check_branch
      %80 = sbr.rel (0) target = $region45
    $region44: #{tpu_custom_call.1} parent=1 // pred_region
      %81 = dma.done [#allocation9], 2048
    $region45: #{tpu_custom_call.1} parent=1 // pred_fallthru
      _
    %v83 = vld [vmem:[#allocation2] sm:$0xff]
    %v84 = vld [vmem:[#allocation2 + $0x8] sm:$0xff]
    %v85 = vld [vmem:[#allocation2 + $0x10] sm:$0xff]
    %v86 = vld [vmem:[#allocation2 + $0x18] sm:$0xff]
    %v87 = vld [vmem:[#allocation2 + $0x20] sm:$0xff]
    %v88 = vld [vmem:[#allocation2 + $0x28] sm:$0xff]
    %v89 = vld [vmem:[#allocation2 + $0x30] sm:$0xff]
    %v90 = vld [vmem:[#allocation2 + $0x38] sm:$0xff]
    %v91 = vld [vmem:[#allocation2 + $0x40] sm:$0xff]
    %v92 = vld [vmem:[#allocation2 + $0x48] sm:$0xff]
    %v93 = vld [vmem:[#allocation2 + $0x50] sm:$0xff]
    %v94 = vld [vmem:[#allocation2 + $0x58] sm:$0xff]
    %v95 = vld [vmem:[#allocation2 + $0x60] sm:$0xff]
    %v96 = vld [vmem:[#allocation2 + $0x68] sm:$0xff]
    %v97 = vld [vmem:[#allocation2 + $0x70] sm:$0xff]
    %v98 = vld [vmem:[#allocation2 + $0x78] sm:$0xff]
    %v115 = vcombine.low %v83, %v85
    %v116 = vcombine.high %v83, %v85
    %v117 = vcombine.low %v87, %v89
    %v118 = vcombine.high %v87, %v89
    %v120 = vunpack.c.l.s4 1983009808
    %v121 = vunpack.c.0.s8 %v120
    %v122 = vlaneseq
    %v123 = vshrl.u32 %v122, 7
    %v124 = vsub.s32 %v121, %v123
    %v125 = vrot.slane %v115, %v124
    %v127 = vunpack.c.l.s4 1983009808
    %v128 = vunpack.c.0.s8 %v127
    %v129 = vlaneseq
    %v130 = vshrl.u32 %v129, 7
    %v131 = vsub.s32 %v128, %v130
    %v132 = vrot.slane %v116, %v131
    %v134 = vunpack.c.l.s4 1983009808
    %v135 = vunpack.c.0.s8 %v134
    %v136 = vlaneseq
    %v137 = vshrl.u32 %v136, 7
    %v138 = vsub.s32 %v135, %v137
    %v139 = vrot.slane %v117, %v138
    %v141 = vunpack.c.l.s4 1983009808
    %v142 = vunpack.c.0.s8 %v141
    %v143 = vlaneseq
    %v144 = vshrl.u32 %v143, 7
    %v145 = vsub.s32 %v142, %v144
    %v146 = vrot.slane %v118, %v145
    %v147 = vcombine.low %v125, %v139
    %v148 = vcombine.high %v125, %v139
    %v149 = vcombine.low %v132, %v146
    %v150 = vcombine.high %v132, %v146
    %v151 = vcombine.low %v84, %v86
    %v152 = vcombine.high %v84, %v86
    %v153 = vcombine.low %v88, %v90
    %v154 = vcombine.high %v88, %v90
    %v156 = vunpack.c.l.s4 1983009808
    %v157 = vunpack.c.0.s8 %v156
    %v158 = vlaneseq
    %v159 = vshrl.u32 %v158, 7
    %v160 = vsub.s32 %v157, %v159
    %v161 = vrot.slane %v151, %v160
    %v163 = vunpack.c.l.s4 1983009808
    %v164 = vunpack.c.0.s8 %v163
    %v165 = vlaneseq
    %v166 = vshrl.u32 %v165, 7
    %v167 = vsub.s32 %v164, %v166
    %v168 = vrot.slane %v152, %v167
    %v170 = vunpack.c.l.s4 1983009808
    %v171 = vunpack.c.0.s8 %v170
    %v172 = vlaneseq
    %v173 = vshrl.u32 %v172, 7
    %v174 = vsub.s32 %v171, %v173
    %v175 = vrot.slane %v153, %v174
    %v177 = vunpack.c.l.s4 1983009808
    %v178 = vunpack.c.0.s8 %v177
    %v179 = vlaneseq
    %v180 = vshrl.u32 %v179, 7
    %v181 = vsub.s32 %v178, %v180
    %v182 = vrot.slane %v154, %v181
    %v183 = vcombine.low %v161, %v175
    %v184 = vcombine.high %v161, %v175
    %v185 = vcombine.low %v168, %v182
    %v186 = vcombine.high %v168, %v182
    %v187 = vcombine.low %v91, %v93
    %v188 = vcombine.high %v91, %v93
    %v189 = vcombine.low %v95, %v97
    %v190 = vcombine.high %v95, %v97
    %v192 = vunpack.c.l.s4 1983009808
    %v193 = vunpack.c.0.s8 %v192
    %v194 = vlaneseq
    %v195 = vshrl.u32 %v194, 7
    %v196 = vsub.s32 %v193, %v195
    %v197 = vrot.slane %v187, %v196
    %v199 = vunpack.c.l.s4 1983009808
    %v200 = vunpack.c.0.s8 %v199
    %v201 = vlaneseq
    %v202 = vshrl.u32 %v201, 7
    %v203 = vsub.s32 %v200, %v202
    %v204 = vrot.slane %v188, %v203
    %v206 = vunpack.c.l.s4 1983009808
    %v207 = vunpack.c.0.s8 %v206
    %v208 = vlaneseq
    %v209 = vshrl.u32 %v208, 7
    %v210 = vsub.s32 %v207, %v209
    %v211 = vrot.slane %v189, %v210
    %v213 = vunpack.c.l.s4 1983009808
    %v214 = vunpack.c.0.s8 %v213
    %v215 = vlaneseq
    %v216 = vshrl.u32 %v215, 7
    %v217 = vsub.s32 %v214, %v216
    %v218 = vrot.slane %v190, %v217
    %v219 = vcombine.low %v197, %v211
    %v220 = vcombine.high %v197, %v211
    %v221 = vcombine.low %v204, %v218
    %v222 = vcombine.high %v204, %v218
    %v223 = vcombine.low %v92, %v94
    %v224 = vcombine.high %v92, %v94
    %v225 = vcombine.low %v96, %v98
    %v226 = vcombine.high %v96, %v98
    %v228 = vunpack.c.l.s4 1983009808
    %v229 = vunpack.c.0.s8 %v228
    %v230 = vlaneseq
    %v231 = vshrl.u32 %v230, 7
    %v232 = vsub.s32 %v229, %v231
    %v233 = vrot.slane %v223, %v232
    %v235 = vunpack.c.l.s4 1983009808
    %v236 = vunpack.c.0.s8 %v235
    %v237 = vlaneseq
    %v238 = vshrl.u32 %v237, 7
    %v239 = vsub.s32 %v236, %v238
    %v240 = vrot.slane %v224, %v239
    %v242 = vunpack.c.l.s4 1983009808
    %v243 = vunpack.c.0.s8 %v242
    %v244 = vlaneseq
    %v245 = vshrl.u32 %v244, 7
    %v246 = vsub.s32 %v243, %v245
    %v247 = vrot.slane %v225, %v246
    %v249 = vunpack.c.l.s4 1983009808
    %v250 = vunpack.c.0.s8 %v249
    %v251 = vlaneseq
    %v252 = vshrl.u32 %v251, 7
    %v253 = vsub.s32 %v250, %v252
    %v254 = vrot.slane %v226, %v253
    %v255 = vcombine.low %v233, %v247
    %v256 = vcombine.high %v233, %v247
    %v257 = vcombine.low %v240, %v254
    %v258 = vcombine.high %v240, %v254
    %v275 = vpack.c.bf16 %v219, %v147
    %v276 = vpack.c.bf16 %v220, %v148
    %v277 = vpack.c.bf16 %v221, %v149
    %v278 = vpack.c.bf16 %v222, %v150
    %v279 = vpack.c.bf16 %v255, %v183
    %v280 = vpack.c.bf16 %v256, %v184
    %v281 = vpack.c.bf16 %v257, %v185
    %v282 = vpack.c.bf16 %v258, %v186
    %v283 = vld [vmem:[#allocation5] sm:$0xff]
    %v284 = vld [vmem:[#allocation5 + $0x8] sm:$0xff]
    %v285 = vld [vmem:[#allocation5 + $0x10] sm:$0xff]
    %v286 = vld [vmem:[#allocation5 + $0x18] sm:$0xff]
    %v287 = vld [vmem:[#allocation5 + $0x20] sm:$0xff]
    %v288 = vld [vmem:[#allocation5 + $0x28] sm:$0xff]
    %v289 = vld [vmem:[#allocation5 + $0x30] sm:$0xff]
    %v290 = vld [vmem:[#allocation5 + $0x38] sm:$0xff]
    %v291 = vld [vmem:[#allocation5 + $0x40] sm:$0xff]
    %v292 = vld [vmem:[#allocation5 + $0x48] sm:$0xff]
    %v293 = vld [vmem:[#allocation5 + $0x50] sm:$0xff]
    %v294 = vld [vmem:[#allocation5 + $0x58] sm:$0xff]
    %v295 = vld [vmem:[#allocation5 + $0x60] sm:$0xff]
    %v296 = vld [vmem:[#allocation5 + $0x68] sm:$0xff]
    %v297 = vld [vmem:[#allocation5 + $0x70] sm:$0xff]
    %v298 = vld [vmem:[#allocation5 + $0x78] sm:$0xff]
    %v299 = vld [vmem:[#allocation5 + $0x80] sm:$0xff]
    %v300 = vld [vmem:[#allocation5 + $0x88] sm:$0xff]
    %v301 = vld [vmem:[#allocation5 + $0x90] sm:$0xff]
    %v302 = vld [vmem:[#allocation5 + $0x98] sm:$0xff]
    %v303 = vld [vmem:[#allocation5 + $0xa0] sm:$0xff]
    %v304 = vld [vmem:[#allocation5 + $0xa8] sm:$0xff]
    %v305 = vld [vmem:[#allocation5 + $0xb0] sm:$0xff]
    %v306 = vld [vmem:[#allocation5 + $0xb8] sm:$0xff]
    %v307 = vld [vmem:[#allocation5 + $0xc0] sm:$0xff]
    %v308 = vld [vmem:[#allocation5 + $0xc8] sm:$0xff]
    %v309 = vld [vmem:[#allocation5 + $0xd0] sm:$0xff]
    %v310 = vld [vmem:[#allocation5 + $0xd8] sm:$0xff]
    %v311 = vld [vmem:[#allocation5 + $0xe0] sm:$0xff]
    %v312 = vld [vmem:[#allocation5 + $0xe8] sm:$0xff]
    %v313 = vld [vmem:[#allocation5 + $0xf0] sm:$0xff]
    %v314 = vld [vmem:[#allocation5 + $0xf8] sm:$0xff]
    %v315 = vld [vmem:[#allocation5 + $0x100] sm:$0xff]
    %v316 = vld [vmem:[#allocation5 + $0x108] sm:$0xff]
    %v317 = vld [vmem:[#allocation5 + $0x110] sm:$0xff]
    %v318 = vld [vmem:[#allocation5 + $0x118] sm:$0xff]
    %v319 = vld [vmem:[#allocation5 + $0x120] sm:$0xff]
    %v320 = vld [vmem:[#allocation5 + $0x128] sm:$0xff]
    %v321 = vld [vmem:[#allocation5 + $0x130] sm:$0xff]
    %v322 = vld [vmem:[#allocation5 + $0x138] sm:$0xff]
    %v323 = vld [vmem:[#allocation5 + $0x140] sm:$0xff]
    %v324 = vld [vmem:[#allocation5 + $0x148] sm:$0xff]
    %v325 = vld [vmem:[#allocation5 + $0x150] sm:$0xff]
    %v326 = vld [vmem:[#allocation5 + $0x158] sm:$0xff]
    %v327 = vld [vmem:[#allocation5 + $0x160] sm:$0xff]
    %v328 = vld [vmem:[#allocation5 + $0x168] sm:$0xff]
    %v329 = vld [vmem:[#allocation5 + $0x170] sm:$0xff]
    %v330 = vld [vmem:[#allocation5 + $0x178] sm:$0xff]
    %v331 = vld [vmem:[#allocation5 + $0x180] sm:$0xff]
    %v332 = vld [vmem:[#allocation5 + $0x188] sm:$0xff]
    %v333 = vld [vmem:[#allocation5 + $0x190] sm:$0xff]
    %v334 = vld [vmem:[#allocation5 + $0x198] sm:$0xff]
    %v335 = vld [vmem:[#allocation5 + $0x1a0] sm:$0xff]
    %v336 = vld [vmem:[#allocation5 + $0x1a8] sm:$0xff]
    %v337 = vld [vmem:[#allocation5 + $0x1b0] sm:$0xff]
    %v338 = vld [vmem:[#allocation5 + $0x1b8] sm:$0xff]
    %v339 = vld [vmem:[#allocation5 + $0x1c0] sm:$0xff]
    %v340 = vld [vmem:[#allocation5 + $0x1c8] sm:$0xff]
    %v341 = vld [vmem:[#allocation5 + $0x1d0] sm:$0xff]
    %v342 = vld [vmem:[#allocation5 + $0x1d8] sm:$0xff]
    %v343 = vld [vmem:[#allocation5 + $0x1e0] sm:$0xff]
    %v344 = vld [vmem:[#allocation5 + $0x1e8] sm:$0xff]
    %v345 = vld [vmem:[#allocation5 + $0x1f0] sm:$0xff]
    %v346 = vld [vmem:[#allocation5 + $0x1f8] sm:$0xff]
    %v347 = vld [vmem:[#allocation5 + $0x200] sm:$0xff]
    %v348 = vld [vmem:[#allocation5 + $0x208] sm:$0xff]
    %v349 = vld [vmem:[#allocation5 + $0x210] sm:$0xff]
    %v350 = vld [vmem:[#allocation5 + $0x218] sm:$0xff]
    %v351 = vld [vmem:[#allocation5 + $0x220] sm:$0xff]
    %v352 = vld [vmem:[#allocation5 + $0x228] sm:$0xff]
    %v353 = vld [vmem:[#allocation5 + $0x230] sm:$0xff]
    %v354 = vld [vmem:[#allocation5 + $0x238] sm:$0xff]
    %v355 = vld [vmem:[#allocation5 + $0x240] sm:$0xff]
    %v356 = vld [vmem:[#allocation5 + $0x248] sm:$0xff]
    %v357 = vld [vmem:[#allocation5 + $0x250] sm:$0xff]
    %v358 = vld [vmem:[#allocation5 + $0x258] sm:$0xff]
    %v359 = vld [vmem:[#allocation5 + $0x260] sm:$0xff]
    %v360 = vld [vmem:[#allocation5 + $0x268] sm:$0xff]
    %v361 = vld [vmem:[#allocation5 + $0x270] sm:$0xff]
    %v362 = vld [vmem:[#allocation5 + $0x278] sm:$0xff]
    %v363 = vld [vmem:[#allocation5 + $0x280] sm:$0xff]
    %v364 = vld [vmem:[#allocation5 + $0x288] sm:$0xff]
    %v365 = vld [vmem:[#allocation5 + $0x290] sm:$0xff]
    %v366 = vld [vmem:[#allocation5 + $0x298] sm:$0xff]
    %v367 = vld [vmem:[#allocation5 + $0x2a0] sm:$0xff]
    %v368 = vld [vmem:[#allocation5 + $0x2a8] sm:$0xff]
    %v369 = vld [vmem:[#allocation5 + $0x2b0] sm:$0xff]
    %v370 = vld [vmem:[#allocation5 + $0x2b8] sm:$0xff]
    %v371 = vld [vmem:[#allocation5 + $0x2c0] sm:$0xff]
    %v372 = vld [vmem:[#allocation5 + $0x2c8] sm:$0xff]
    %v373 = vld [vmem:[#allocation5 + $0x2d0] sm:$0xff]
    %v374 = vld [vmem:[#allocation5 + $0x2d8] sm:$0xff]
    %v375 = vld [vmem:[#allocation5 + $0x2e0] sm:$0xff]
    %v376 = vld [vmem:[#allocation5 + $0x2e8] sm:$0xff]
    %v377 = vld [vmem:[#allocation5 + $0x2f0] sm:$0xff]
    %v378 = vld [vmem:[#allocation5 + $0x2f8] sm:$0xff]
    %v379 = vld [vmem:[#allocation5 + $0x300] sm:$0xff]
    %v380 = vld [vmem:[#allocation5 + $0x308] sm:$0xff]
    %v381 = vld [vmem:[#allocation5 + $0x310] sm:$0xff]
    %v382 = vld [vmem:[#allocation5 + $0x318] sm:$0xff]
    %v383 = vld [vmem:[#allocation5 + $0x320] sm:$0xff]
    %v384 = vld [vmem:[#allocation5 + $0x328] sm:$0xff]
    %v385 = vld [vmem:[#allocation5 + $0x330] sm:$0xff]
    %v386 = vld [vmem:[#allocation5 + $0x338] sm:$0xff]
    %v387 = vld [vmem:[#allocation5 + $0x340] sm:$0xff]
    %v388 = vld [vmem:[#allocation5 + $0x348] sm:$0xff]
    %v389 = vld [vmem:[#allocation5 + $0x350] sm:$0xff]
    %v390 = vld [vmem:[#allocation5 + $0x358] sm:$0xff]
    %v391 = vld [vmem:[#allocation5 + $0x360] sm:$0xff]
    %v392 = vld [vmem:[#allocation5 + $0x368] sm:$0xff]
    %v393 = vld [vmem:[#allocation5 + $0x370] sm:$0xff]
    %v394 = vld [vmem:[#allocation5 + $0x378] sm:$0xff]
    %v395 = vld [vmem:[#allocation5 + $0x380] sm:$0xff]
    %v396 = vld [vmem:[#allocation5 + $0x388] sm:$0xff]
    %v397 = vld [vmem:[#allocation5 + $0x390] sm:$0xff]
    %v398 = vld [vmem:[#allocation5 + $0x398] sm:$0xff]
    %v399 = vld [vmem:[#allocation5 + $0x3a0] sm:$0xff]
    %v400 = vld [vmem:[#allocation5 + $0x3a8] sm:$0xff]
    %v401 = vld [vmem:[#allocation5 + $0x3b0] sm:$0xff]
    %v402 = vld [vmem:[#allocation5 + $0x3b8] sm:$0xff]
    %v403 = vld [vmem:[#allocation5 + $0x3c0] sm:$0xff]
    %v404 = vld [vmem:[#allocation5 + $0x3c8] sm:$0xff]
    %v405 = vld [vmem:[#allocation5 + $0x3d0] sm:$0xff]
    %v406 = vld [vmem:[#allocation5 + $0x3d8] sm:$0xff]
    %v407 = vld [vmem:[#allocation5 + $0x3e0] sm:$0xff]
    %v408 = vld [vmem:[#allocation5 + $0x3e8] sm:$0xff]
    %v409 = vld [vmem:[#allocation5 + $0x3f0] sm:$0xff]
    %v410 = vld [vmem:[#allocation5 + $0x3f8] sm:$0xff]
    %v411 = vld [vmem:[%s2] sm:$0x3]
    %v413 = vlaneseq
    %v414 = vshrl.u32 %v413, 7
    %v415 = vsub.s32 0, %v414
    %v416 = vrot.slane %v411, %v415
    %v417 = vlaneseq
    %v418 = vshrl.u32 %v417, 7
    %v419 = vsub.s32 1, %v418
    %v420 = vrot.slane %v411, %v419
    %v551 = vunpack.c.l.b16 %v283
    %v552 = vunpack.c.h.b16 %v283
    %v553 = vunpack.c.l.b16 %v284
    %v554 = vunpack.c.h.b16 %v284
    %v555 = vunpack.c.l.b16 %v285
    %v556 = vunpack.c.h.b16 %v285
    %v557 = vunpack.c.l.b16 %v286
    %v558 = vunpack.c.h.b16 %v286
    %v559 = vunpack.c.l.b16 %v287
    %v560 = vunpack.c.h.b16 %v287
    %v561 = vunpack.c.l.b16 %v288
    %v562 = vunpack.c.h.b16 %v288
    %v563 = vunpack.c.l.b16 %v289
    %v564 = vunpack.c.h.b16 %v289
    %v565 = vunpack.c.l.b16 %v290
    %v566 = vunpack.c.h.b16 %v290
    %v567 = vunpack.c.l.b16 %v291
    %v568 = vunpack.c.h.b16 %v291
    %v569 = vunpack.c.l.b16 %v292
    %v570 = vunpack.c.h.b16 %v292
    %v571 = vunpack.c.l.b16 %v293
    %v572 = vunpack.c.h.b16 %v293
    %v573 = vunpack.c.l.b16 %v294
    %v574 = vunpack.c.h.b16 %v294
    %v575 = vunpack.c.l.b16 %v295
    %v576 = vunpack.c.h.b16 %v295
    %v577 = vunpack.c.l.b16 %v296
    %v578 = vunpack.c.h.b16 %v296
    %v579 = vunpack.c.l.b16 %v297
    %v580 = vunpack.c.h.b16 %v297
    %v581 = vunpack.c.l.b16 %v298
    %v582 = vunpack.c.h.b16 %v298
    %v583 = vunpack.c.l.b16 %v299
    %v584 = vunpack.c.h.b16 %v299
    %v585 = vunpack.c.l.b16 %v300
    %v586 = vunpack.c.h.b16 %v300
    %v587 = vunpack.c.l.b16 %v301
    %v588 = vunpack.c.h.b16 %v301
    %v589 = vunpack.c.l.b16 %v302
    %v590 = vunpack.c.h.b16 %v302
    %v591 = vunpack.c.l.b16 %v303
    %v592 = vunpack.c.h.b16 %v303
    %v593 = vunpack.c.l.b16 %v304
    %v594 = vunpack.c.h.b16 %v304
    %v595 = vunpack.c.l.b16 %v305
    %v596 = vunpack.c.h.b16 %v305
    %v597 = vunpack.c.l.b16 %v306
    %v598 = vunpack.c.h.b16 %v306
    %v599 = vunpack.c.l.b16 %v307
    %v600 = vunpack.c.h.b16 %v307
    %v601 = vunpack.c.l.b16 %v308
    %v602 = vunpack.c.h.b16 %v308
    %v603 = vunpack.c.l.b16 %v309
    %v604 = vunpack.c.h.b16 %v309
    %v605 = vunpack.c.l.b16 %v310
    %v606 = vunpack.c.h.b16 %v310
    %v607 = vunpack.c.l.b16 %v311
    %v608 = vunpack.c.h.b16 %v311
    %v609 = vunpack.c.l.b16 %v312
    %v610 = vunpack.c.h.b16 %v312
    %v611 = vunpack.c.l.b16 %v313
    %v612 = vunpack.c.h.b16 %v313
    %v613 = vunpack.c.l.b16 %v314
    %v614 = vunpack.c.h.b16 %v314
    %v615 = vunpack.c.l.b16 %v315
    %v616 = vunpack.c.h.b16 %v315
    %v617 = vunpack.c.l.b16 %v316
    %v618 = vunpack.c.h.b16 %v316
    %v619 = vunpack.c.l.b16 %v317
    %v620 = vunpack.c.h.b16 %v317
    %v621 = vunpack.c.l.b16 %v318
    %v622 = vunpack.c.h.b16 %v318
    %v623 = vunpack.c.l.b16 %v319
    %v624 = vunpack.c.h.b16 %v319
    %v625 = vunpack.c.l.b16 %v320
    %v626 = vunpack.c.h.b16 %v320
    %v627 = vunpack.c.l.b16 %v321
    %v628 = vunpack.c.h.b16 %v321
    %v629 = vunpack.c.l.b16 %v322
    %v630 = vunpack.c.h.b16 %v322
    %v631 = vunpack.c.l.b16 %v323
    %v632 = vunpack.c.h.b16 %v323
    %v633 = vunpack.c.l.b16 %v324
    %v634 = vunpack.c.h.b16 %v324
    %v635 = vunpack.c.l.b16 %v325
    %v636 = vunpack.c.h.b16 %v325
    %v637 = vunpack.c.l.b16 %v326
    %v638 = vunpack.c.h.b16 %v326
    %v639 = vunpack.c.l.b16 %v327
    %v640 = vunpack.c.h.b16 %v327
    %v641 = vunpack.c.l.b16 %v328
    %v642 = vunpack.c.h.b16 %v328
    %v643 = vunpack.c.l.b16 %v329
    %v644 = vunpack.c.h.b16 %v329
    %v645 = vunpack.c.l.b16 %v330
    %v646 = vunpack.c.h.b16 %v330
    %v647 = vunpack.c.l.b16 %v331
    %v648 = vunpack.c.h.b16 %v331
    %v649 = vunpack.c.l.b16 %v332
    %v650 = vunpack.c.h.b16 %v332
    %v651 = vunpack.c.l.b16 %v333
    %v652 = vunpack.c.h.b16 %v333
    %v653 = vunpack.c.l.b16 %v334
    %v654 = vunpack.c.h.b16 %v334
    %v655 = vunpack.c.l.b16 %v335
    %v656 = vunpack.c.h.b16 %v335
    %v657 = vunpack.c.l.b16 %v336
    %v658 = vunpack.c.h.b16 %v336
    %v659 = vunpack.c.l.b16 %v337
    %v660 = vunpack.c.h.b16 %v337
    %v661 = vunpack.c.l.b16 %v338
    %v662 = vunpack.c.h.b16 %v338
    %v663 = vunpack.c.l.b16 %v339
    %v664 = vunpack.c.h.b16 %v339
    %v665 = vunpack.c.l.b16 %v340
    %v666 = vunpack.c.h.b16 %v340
    %v667 = vunpack.c.l.b16 %v341
    %v668 = vunpack.c.h.b16 %v341
    %v669 = vunpack.c.l.b16 %v342
    %v670 = vunpack.c.h.b16 %v342
    %v671 = vunpack.c.l.b16 %v343
    %v672 = vunpack.c.h.b16 %v343
    %v673 = vunpack.c.l.b16 %v344
    %v674 = vunpack.c.h.b16 %v344
    %v675 = vunpack.c.l.b16 %v345
    %v676 = vunpack.c.h.b16 %v345
    %v677 = vunpack.c.l.b16 %v346
    %v678 = vunpack.c.h.b16 %v346
    %v679 = vunpack.c.l.b16 %v347
    %v680 = vunpack.c.h.b16 %v347
    %v681 = vunpack.c.l.b16 %v348
    %v682 = vunpack.c.h.b16 %v348
    %v683 = vunpack.c.l.b16 %v349
    %v684 = vunpack.c.h.b16 %v349
    %v685 = vunpack.c.l.b16 %v350
    %v686 = vunpack.c.h.b16 %v350
    %v687 = vunpack.c.l.b16 %v351
    %v688 = vunpack.c.h.b16 %v351
    %v689 = vunpack.c.l.b16 %v352
    %v690 = vunpack.c.h.b16 %v352
    %v691 = vunpack.c.l.b16 %v353
    %v692 = vunpack.c.h.b16 %v353
    %v693 = vunpack.c.l.b16 %v354
    %v694 = vunpack.c.h.b16 %v354
    %v695 = vunpack.c.l.b16 %v355
    %v696 = vunpack.c.h.b16 %v355
    %v697 = vunpack.c.l.b16 %v356
    %v698 = vunpack.c.h.b16 %v356
    %v699 = vunpack.c.l.b16 %v357
    %v700 = vunpack.c.h.b16 %v357
    %v701 = vunpack.c.l.b16 %v358
    %v702 = vunpack.c.h.b16 %v358
    %v703 = vunpack.c.l.b16 %v359
    %v704 = vunpack.c.h.b16 %v359
    %v705 = vunpack.c.l.b16 %v360
    %v706 = vunpack.c.h.b16 %v360
    %v707 = vunpack.c.l.b16 %v361
    %v708 = vunpack.c.h.b16 %v361
    %v709 = vunpack.c.l.b16 %v362
    %v710 = vunpack.c.h.b16 %v362
    %v711 = vunpack.c.l.b16 %v363
    %v712 = vunpack.c.h.b16 %v363
    %v713 = vunpack.c.l.b16 %v364
    %v714 = vunpack.c.h.b16 %v364
    %v715 = vunpack.c.l.b16 %v365
    %v716 = vunpack.c.h.b16 %v365
    %v717 = vunpack.c.l.b16 %v366
    %v718 = vunpack.c.h.b16 %v366
    %v719 = vunpack.c.l.b16 %v367
    %v720 = vunpack.c.h.b16 %v367
    %v721 = vunpack.c.l.b16 %v368
    %v722 = vunpack.c.h.b16 %v368
    %v723 = vunpack.c.l.b16 %v369
    %v724 = vunpack.c.h.b16 %v369
    %v725 = vunpack.c.l.b16 %v370
    %v726 = vunpack.c.h.b16 %v370
    %v727 = vunpack.c.l.b16 %v371
    %v728 = vunpack.c.h.b16 %v371
    %v729 = vunpack.c.l.b16 %v372
    %v730 = vunpack.c.h.b16 %v372
    %v731 = vunpack.c.l.b16 %v373
    %v732 = vunpack.c.h.b16 %v373
    %v733 = vunpack.c.l.b16 %v374
    %v734 = vunpack.c.h.b16 %v374
    %v735 = vunpack.c.l.b16 %v375
    %v736 = vunpack.c.h.b16 %v375
    %v737 = vunpack.c.l.b16 %v376
    %v738 = vunpack.c.h.b16 %v376
    %v739 = vunpack.c.l.b16 %v377
    %v740 = vunpack.c.h.b16 %v377
    %v741 = vunpack.c.l.b16 %v378
    %v742 = vunpack.c.h.b16 %v378
    %v743 = vunpack.c.l.b16 %v379
    %v744 = vunpack.c.h.b16 %v379
    %v745 = vunpack.c.l.b16 %v380
    %v746 = vunpack.c.h.b16 %v380
    %v747 = vunpack.c.l.b16 %v381
    %v748 = vunpack.c.h.b16 %v381
    %v749 = vunpack.c.l.b16 %v382
    %v750 = vunpack.c.h.b16 %v382
    %v751 = vunpack.c.l.b16 %v383
    %v752 = vunpack.c.h.b16 %v383
    %v753 = vunpack.c.l.b16 %v384
    %v754 = vunpack.c.h.b16 %v384
    %v755 = vunpack.c.l.b16 %v385
    %v756 = vunpack.c.h.b16 %v385
    %v757 = vunpack.c.l.b16 %v386
    %v758 = vunpack.c.h.b16 %v386
    %v759 = vunpack.c.l.b16 %v387
    %v760 = vunpack.c.h.b16 %v387
    %v761 = vunpack.c.l.b16 %v388
    %v762 = vunpack.c.h.b16 %v388
    %v763 = vunpack.c.l.b16 %v389
    %v764 = vunpack.c.h.b16 %v389
    %v765 = vunpack.c.l.b16 %v390
    %v766 = vunpack.c.h.b16 %v390
    %v767 = vunpack.c.l.b16 %v391
    %v768 = vunpack.c.h.b16 %v391
    %v769 = vunpack.c.l.b16 %v392
    %v770 = vunpack.c.h.b16 %v392
    %v771 = vunpack.c.l.b16 %v393
    %v772 = vunpack.c.h.b16 %v393
    %v773 = vunpack.c.l.b16 %v394
    %v774 = vunpack.c.h.b16 %v394
    %v775 = vunpack.c.l.b16 %v395
    %v776 = vunpack.c.h.b16 %v395
    %v777 = vunpack.c.l.b16 %v396
    %v778 = vunpack.c.h.b16 %v396
    %v779 = vunpack.c.l.b16 %v397
    %v780 = vunpack.c.h.b16 %v397
    %v781 = vunpack.c.l.b16 %v398
    %v782 = vunpack.c.h.b16 %v398
    %v783 = vunpack.c.l.b16 %v399
    %v784 = vunpack.c.h.b16 %v399
    %v785 = vunpack.c.l.b16 %v400
    %v786 = vunpack.c.h.b16 %v400
    %v787 = vunpack.c.l.b16 %v401
    %v788 = vunpack.c.h.b16 %v401
    %v789 = vunpack.c.l.b16 %v402
    %v790 = vunpack.c.h.b16 %v402
    %v791 = vunpack.c.l.b16 %v403
    %v792 = vunpack.c.h.b16 %v403
    %v793 = vunpack.c.l.b16 %v404
    %v794 = vunpack.c.h.b16 %v404
    %v795 = vunpack.c.l.b16 %v405
    %v796 = vunpack.c.h.b16 %v405
    %v797 = vunpack.c.l.b16 %v406
    %v798 = vunpack.c.h.b16 %v406
    %v799 = vunpack.c.l.b16 %v407
    %v800 = vunpack.c.h.b16 %v407
    %v801 = vunpack.c.l.b16 %v408
    %v802 = vunpack.c.h.b16 %v408
    %v803 = vunpack.c.l.b16 %v409
    %v804 = vunpack.c.h.b16 %v409
    %v805 = vunpack.c.l.b16 %v410
    %v806 = vunpack.c.h.b16 %v410
    %v807 = vpack.c.b16 %v553, %v551
    %v808 = vpack.c.b16 %v554, %v552
    %v809 = vpack.c.b16 %v557, %v555
    %v810 = vpack.c.b16 %v558, %v556
    %v811 = vpack.c.b16 %v561, %v559
    %v812 = vpack.c.b16 %v562, %v560
    %v813 = vpack.c.b16 %v565, %v563
    %v814 = vpack.c.b16 %v566, %v564
    %v815 = vpack.c.b16 %v569, %v567
    %v816 = vpack.c.b16 %v570, %v568
    %v817 = vpack.c.b16 %v573, %v571
    %v818 = vpack.c.b16 %v574, %v572
    %v819 = vpack.c.b16 %v577, %v575
    %v820 = vpack.c.b16 %v578, %v576
    %v821 = vpack.c.b16 %v581, %v579
    %v822 = vpack.c.b16 %v582, %v580
    %v823 = vpack.c.b16 %v585, %v583
    %v824 = vpack.c.b16 %v586, %v584
    %v825 = vpack.c.b16 %v589, %v587
    %v826 = vpack.c.b16 %v590, %v588
    %v827 = vpack.c.b16 %v593, %v591
    %v828 = vpack.c.b16 %v594, %v592
    %v829 = vpack.c.b16 %v597, %v595
    %v830 = vpack.c.b16 %v598, %v596
    %v831 = vpack.c.b16 %v601, %v599
    %v832 = vpack.c.b16 %v602, %v600
    %v833 = vpack.c.b16 %v605, %v603
    %v834 = vpack.c.b16 %v606, %v604
    %v835 = vpack.c.b16 %v609, %v607
    %v836 = vpack.c.b16 %v610, %v608
    %v837 = vpack.c.b16 %v613, %v611
    %v838 = vpack.c.b16 %v614, %v612
    %v839 = vpack.c.b16 %v617, %v615
    %v840 = vpack.c.b16 %v618, %v616
    %v841 = vpack.c.b16 %v621, %v619
    %v842 = vpack.c.b16 %v622, %v620
    %v843 = vpack.c.b16 %v625, %v623
    %v844 = vpack.c.b16 %v626, %v624
    %v845 = vpack.c.b16 %v629, %v627
    %v846 = vpack.c.b16 %v630, %v628
    %v847 = vpack.c.b16 %v633, %v631
    %v848 = vpack.c.b16 %v634, %v632
    %v849 = vpack.c.b16 %v637, %v635
    %v850 = vpack.c.b16 %v638, %v636
    %v851 = vpack.c.b16 %v641, %v639
    %v852 = vpack.c.b16 %v642, %v640
    %v853 = vpack.c.b16 %v645, %v643
    %v854 = vpack.c.b16 %v646, %v644
    %v855 = vpack.c.b16 %v649, %v647
    %v856 = vpack.c.b16 %v650, %v648
    %v857 = vpack.c.b16 %v653, %v651
    %v858 = vpack.c.b16 %v654, %v652
    %v859 = vpack.c.b16 %v657, %v655
    %v860 = vpack.c.b16 %v658, %v656
    %v861 = vpack.c.b16 %v661, %v659
    %v862 = vpack.c.b16 %v662, %v660
    %v863 = vpack.c.b16 %v665, %v663
    %v864 = vpack.c.b16 %v666, %v664
    %v865 = vpack.c.b16 %v669, %v667
    %v866 = vpack.c.b16 %v670, %v668
    %v867 = vpack.c.b16 %v673, %v671
    %v868 = vpack.c.b16 %v674, %v672
    %v869 = vpack.c.b16 %v677, %v675
    %v870 = vpack.c.b16 %v678, %v676
    %v871 = vpack.c.b16 %v681, %v679
    %v872 = vpack.c.b16 %v682, %v680
    %v873 = vpack.c.b16 %v685, %v683
    %v874 = vpack.c.b16 %v686, %v684
    %v875 = vpack.c.b16 %v689, %v687
    %v876 = vpack.c.b16 %v690, %v688
    %v877 = vpack.c.b16 %v693, %v691
    %v878 = vpack.c.b16 %v694, %v692
    %v879 = vpack.c.b16 %v697, %v695
    %v880 = vpack.c.b16 %v698, %v696
    %v881 = vpack.c.b16 %v701, %v699
    %v882 = vpack.c.b16 %v702, %v700
    %v883 = vpack.c.b16 %v705, %v703
    %v884 = vpack.c.b16 %v706, %v704
    %v885 = vpack.c.b16 %v709, %v707
    %v886 = vpack.c.b16 %v710, %v708
    %v887 = vpack.c.b16 %v713, %v711
    %v888 = vpack.c.b16 %v714, %v712
    %v889 = vpack.c.b16 %v717, %v715
    %v890 = vpack.c.b16 %v718, %v716
    %v891 = vpack.c.b16 %v721, %v719
    %v892 = vpack.c.b16 %v722, %v720
    %v893 = vpack.c.b16 %v725, %v723
    %v894 = vpack.c.b16 %v726, %v724
    %v895 = vpack.c.b16 %v729, %v727
    %v896 = vpack.c.b16 %v730, %v728
    %v897 = vpack.c.b16 %v733, %v731
    %v898 = vpack.c.b16 %v734, %v732
    %v899 = vpack.c.b16 %v737, %v735
    %v900 = vpack.c.b16 %v738, %v736
    %v901 = vpack.c.b16 %v741, %v739
    %v902 = vpack.c.b16 %v742, %v740
    %v903 = vpack.c.b16 %v745, %v743
    %v904 = vpack.c.b16 %v746, %v744
    %v905 = vpack.c.b16 %v749, %v747
    %v906 = vpack.c.b16 %v750, %v748
    %v907 = vpack.c.b16 %v753, %v751
    %v908 = vpack.c.b16 %v754, %v752
    %v909 = vpack.c.b16 %v757, %v755
    %v910 = vpack.c.b16 %v758, %v756
    %v911 = vpack.c.b16 %v761, %v759
    %v912 = vpack.c.b16 %v762, %v760
    %v913 = vpack.c.b16 %v765, %v763
    %v914 = vpack.c.b16 %v766, %v764
    %v915 = vpack.c.b16 %v769, %v767
    %v916 = vpack.c.b16 %v770, %v768
    %v917 = vpack.c.b16 %v773, %v771
    %v918 = vpack.c.b16 %v774, %v772
    %v919 = vpack.c.b16 %v777, %v775
    %v920 = vpack.c.b16 %v778, %v776
    %v921 = vpack.c.b16 %v781, %v779
    %v922 = vpack.c.b16 %v782, %v780
    %v923 = vpack.c.b16 %v785, %v783
    %v924 = vpack.c.b16 %v786, %v784
    %v925 = vpack.c.b16 %v789, %v787
    %v926 = vpack.c.b16 %v790, %v788
    %v927 = vpack.c.b16 %v793, %v791
    %v928 = vpack.c.b16 %v794, %v792
    %v929 = vpack.c.b16 %v797, %v795
    %v930 = vpack.c.b16 %v798, %v796
    %v931 = vpack.c.b16 %v801, %v799
    %v932 = vpack.c.b16 %v802, %v800
    %v933 = vpack.c.b16 %v805, %v803
    %v934 = vpack.c.b16 %v806, %v804
    %1063 = vmatprep.subr.bf16.mxu0 %v808
    %1064 = vmatpush1.bf16.msra.mxu0 %v807
    %1065 = vmatprep.subr.bf16.mxu0 %v810
    %1066 = vmatpush1.bf16.msra.mxu0 %v809
    %1067 = vmatprep.subr.bf16.mxu0 %v812
    %1068 = vmatpush1.bf16.msra.mxu0 %v811
    %1069 = vmatprep.subr.bf16.mxu0 %v814
    %1070 = vmatpush1.bf16.msra.mxu0 %v813
    %1071 = vmatprep.subr.bf16.mxu0 %v816
    %1072 = vmatpush1.bf16.msra.mxu0 %v815
    %1073 = vmatprep.subr.bf16.mxu0 %v818
    %1074 = vmatpush1.bf16.msra.mxu0 %v817
    %1075 = vmatprep.subr.bf16.mxu0 %v820
    %1076 = vmatpush1.bf16.msra.mxu0 %v819
    %1077 = vmatprep.subr.bf16.mxu0 %v822
    %1078 = vmatpush1.bf16.msra.mxu0 %v821
    %1079 = vmatprep.subr.bf16.mxu0 %v824
    %1080 = vmatpush1.bf16.msra.mxu0 %v823
    %1081 = vmatprep.subr.bf16.mxu0 %v826
    %1082 = vmatpush1.bf16.msra.mxu0 %v825
    %1083 = vmatprep.subr.bf16.mxu0 %v828
    %1084 = vmatpush1.bf16.msra.mxu0 %v827
    %1085 = vmatprep.subr.bf16.mxu0 %v830
    %1086 = vmatpush1.bf16.msra.mxu0 %v829
    %1087 = vmatprep.subr.bf16.mxu0 %v832
    %1088 = vmatpush1.bf16.msra.mxu0 %v831
    %1089 = vmatprep.subr.bf16.mxu0 %v834
    %1090 = vmatpush1.bf16.msra.mxu0 %v833
    %1091 = vmatprep.subr.bf16.mxu0 %v836
    %1092 = vmatpush1.bf16.msra.mxu0 %v835
    %1093 = vmatprep.subr.bf16.mxu0 %v838
    %1094 = vmatpush1.bf16.msra.mxu0 %v837
    %1095 = vmatprep.mubr.bf16.mxu0 %v276
    %1096 = vmatmul.mubr.bf16.gmra.mrb[0].mxu0 %v275
    %v1097 = vpop.f32.mrb[0].mxu0
    %v1098 = vadd.f32 %v416, %v1097
    %v1099 = vpop.f32.mrb[0].mxu0
    %v1100 = vadd.f32 %v420, %v1099
    %v1101 = vpop.f32.mrb[0].mxu0
    %v1102 = vadd.f32 %v416, %v1101
    %v1103 = vpop.f32.mrb[0].mxu0
    %v1104 = vadd.f32 %v420, %v1103
    %1105 = vdwg.mxu0
    %1106 = vmatprep.subr.bf16.mxu0 %v840
    %1107 = vmatpush1.bf16.msra.mxu0 %v839
    %1108 = vmatprep.subr.bf16.mxu0 %v842
    %1109 = vmatpush1.bf16.msra.mxu0 %v841
    %1110 = vmatprep.subr.bf16.mxu0 %v844
    %1111 = vmatpush1.bf16.msra.mxu0 %v843
    %1112 = vmatprep.subr.bf16.mxu0 %v846
    %1113 = vmatpush1.bf16.msra.mxu0 %v845
    %1114 = vmatprep.subr.bf16.mxu0 %v848
    %1115 = vmatpush1.bf16.msra.mxu0 %v847
    %1116 = vmatprep.subr.bf16.mxu0 %v850
    %1117 = vmatpush1.bf16.msra.mxu0 %v849
    %1118 = vmatprep.subr.bf16.mxu0 %v852
    %1119 = vmatpush1.bf16.msra.mxu0 %v851
    %1120 = vmatprep.subr.bf16.mxu0 %v854
    %1121 = vmatpush1.bf16.msra.mxu0 %v853
    %1122 = vmatprep.subr.bf16.mxu0 %v856
    %1123 = vmatpush1.bf16.msra.mxu0 %v855
    %1124 = vmatprep.subr.bf16.mxu0 %v858
    %1125 = vmatpush1.bf16.msra.mxu0 %v857
    %1126 = vmatprep.subr.bf16.mxu0 %v860
    %1127 = vmatpush1.bf16.msra.mxu0 %v859
    %1128 = vmatprep.subr.bf16.mxu0 %v862
    %1129 = vmatpush1.bf16.msra.mxu0 %v861
    %1130 = vmatprep.subr.bf16.mxu0 %v864
    %1131 = vmatpush1.bf16.msra.mxu0 %v863
    %1132 = vmatprep.subr.bf16.mxu0 %v866
    %1133 = vmatpush1.bf16.msra.mxu0 %v865
    %1134 = vmatprep.subr.bf16.mxu0 %v868
    %1135 = vmatpush1.bf16.msra.mxu0 %v867
    %1136 = vmatprep.subr.bf16.mxu0 %v870
    %1137 = vmatpush1.bf16.msra.mxu0 %v869
    %1138 = vmatprep.mubr.bf16.mxu0 %v278
    %1139 = vmatmul.mubr.bf16.gmra.mrb[0].mxu0 %v277
    %v1140 = vpop.f32.mrb[0].mxu0
    %v1141 = vadd.f32 %v1098, %v1140
    %v1142 = vpop.f32.mrb[0].mxu0
    %v1143 = vadd.f32 %v1100, %v1142
    %v1144 = vpop.f32.mrb[0].mxu0
    %v1145 = vadd.f32 %v1102, %v1144
    %v1146 = vpop.f32.mrb[0].mxu0
    %v1147 = vadd.f32 %v1104, %v1146
    %1148 = vdwg.mxu0
    %1149 = vmatprep.subr.bf16.mxu0 %v872
    %1150 = vmatpush1.bf16.msra.mxu0 %v871
    %1151 = vmatprep.subr.bf16.mxu0 %v874
    %1152 = vmatpush1.bf16.msra.mxu0 %v873
    %1153 = vmatprep.subr.bf16.mxu0 %v876
    %1154 = vmatpush1.bf16.msra.mxu0 %v875
    %1155 = vmatprep.subr.bf16.mxu0 %v878
    %1156 = vmatpush1.bf16.msra.mxu0 %v877
    %1157 = vmatprep.subr.bf16.mxu0 %v880
    %1158 = vmatpush1.bf16.msra.mxu0 %v879
    %1159 = vmatprep.subr.bf16.mxu0 %v882
    %1160 = vmatpush1.bf16.msra.mxu0 %v881
    %1161 = vmatprep.subr.bf16.mxu0 %v884
    %1162 = vmatpush1.bf16.msra.mxu0 %v883
    %1163 = vmatprep.subr.bf16.mxu0 %v886
    %1164 = vmatpush1.bf16.msra.mxu0 %v885
    %1165 = vmatprep.subr.bf16.mxu0 %v888
    %1166 = vmatpush1.bf16.msra.mxu0 %v887
    %1167 = vmatprep.subr.bf16.mxu0 %v890
    %1168 = vmatpush1.bf16.msra.mxu0 %v889
    %1169 = vmatprep.subr.bf16.mxu0 %v892
    %1170 = vmatpush1.bf16.msra.mxu0 %v891
    %1171 = vmatprep.subr.bf16.mxu0 %v894
    %1172 = vmatpush1.bf16.msra.mxu0 %v893
    %1173 = vmatprep.subr.bf16.mxu0 %v896
    %1174 = vmatpush1.bf16.msra.mxu0 %v895
    %1175 = vmatprep.subr.bf16.mxu0 %v898
    %1176 = vmatpush1.bf16.msra.mxu0 %v897
    %1177 = vmatprep.subr.bf16.mxu0 %v900
    %1178 = vmatpush1.bf16.msra.mxu0 %v899
    %1179 = vmatprep.subr.bf16.mxu0 %v902
    %1180 = vmatpush1.bf16.msra.mxu0 %v901
    %1181 = vmatprep.mubr.bf16.mxu0 %v280
    %1182 = vmatmul.mubr.bf16.gmra.mrb[0].mxu0 %v279
    %v1183 = vpop.f32.mrb[0].mxu0
    %v1184 = vadd.f32 %v1141, %v1183
    %v1185 = vpop.f32.mrb[0].mxu0
    %v1186 = vadd.f32 %v1143, %v1185
    %v1187 = vpop.f32.mrb[0].mxu0
    %v1188 = vadd.f32 %v1145, %v1187
    %v1189 = vpop.f32.mrb[0].mxu0
    %v1190 = vadd.f32 %v1147, %v1189
    %1191 = vdwg.mxu0
    %1192 = vmatprep.subr.bf16.mxu0 %v904
    %1193 = vmatpush1.bf16.msra.mxu0 %v903
    %1194 = vmatprep.subr.bf16.mxu0 %v906
    %1195 = vmatpush1.bf16.msra.mxu0 %v905
    %1196 = vmatprep.subr.bf16.mxu0 %v908
    %1197 = vmatpush1.bf16.msra.mxu0 %v907
    %1198 = vmatprep.subr.bf16.mxu0 %v910
    %1199 = vmatpush1.bf16.msra.mxu0 %v909
    %1200 = vmatprep.subr.bf16.mxu0 %v912
    %1201 = vmatpush1.bf16.msra.mxu0 %v911
    %1202 = vmatprep.subr.bf16.mxu0 %v914
    %1203 = vmatpush1.bf16.msra.mxu0 %v913
    %1204 = vmatprep.subr.bf16.mxu0 %v916
    %1205 = vmatpush1.bf16.msra.mxu0 %v915
    %1206 = vmatprep.subr.bf16.mxu0 %v918
    %1207 = vmatpush1.bf16.msra.mxu0 %v917
    %1208 = vmatprep.subr.bf16.mxu0 %v920
    %1209 = vmatpush1.bf16.msra.mxu0 %v919
    %1210 = vmatprep.subr.bf16.mxu0 %v922
    %1211 = vmatpush1.bf16.msra.mxu0 %v921
    %1212 = vmatprep.subr.bf16.mxu0 %v924
    %1213 = vmatpush1.bf16.msra.mxu0 %v923
    %1214 = vmatprep.subr.bf16.mxu0 %v926
    %1215 = vmatpush1.bf16.msra.mxu0 %v925
    %1216 = vmatprep.subr.bf16.mxu0 %v928
    %1217 = vmatpush1.bf16.msra.mxu0 %v927
    %1218 = vmatprep.subr.bf16.mxu0 %v930
    %1219 = vmatpush1.bf16.msra.mxu0 %v929
    %1220 = vmatprep.subr.bf16.mxu0 %v932
    %1221 = vmatpush1.bf16.msra.mxu0 %v931
    %1222 = vmatprep.subr.bf16.mxu0 %v934
    %1223 = vmatpush1.bf16.msra.mxu0 %v933
    %1224 = vmatprep.mubr.bf16.mxu0 %v282
    %1225 = vmatmul.mubr.bf16.gmra.mrb[0].mxu0 %v281
    %v1226 = vpop.f32.mrb[0].mxu0
    %v1227 = vadd.f32 %v1184, %v1226
    %v1228 = vpop.f32.mrb[0].mxu0
    %v1229 = vadd.f32 %v1186, %v1228
    %v1230 = vpop.f32.mrb[0].mxu0
    %v1231 = vadd.f32 %v1188, %v1230
    %v1232 = vpop.f32.mrb[0].mxu0
    %v1233 = vadd.f32 %v1190, %v1232
    %1234 = vdwg.mxu0
    %v1235 = vmax.f32 %v1227, 0.0
    %v1236 = vmax.f32 %v1229, 0.0
    %v1237 = vmax.f32 %v1231, 0.0
    %v1238 = vmax.f32 %v1233, 0.0
    %v1239 = vpack.c.bf16 %v1237, %v1235
    %v1240 = vpack.c.bf16 %v1238, %v1236
    %v1241 = vld [vmem:[#allocation7] sm:$0xff]
    %v1242 = vld [vmem:[#allocation7 + $0x8] sm:$0xff]
    %v1243 = vld [vmem:[#allocation7 + $0x10] sm:$0xff]
    %v1244 = vld [vmem:[#allocation7 + $0x18] sm:$0xff]
    %v1245 = vld [vmem:[#allocation7 + $0x20] sm:$0xff]
    %v1246 = vld [vmem:[#allocation7 + $0x28] sm:$0xff]
    %v1247 = vld [vmem:[#allocation7 + $0x30] sm:$0xff]
    %v1248 = vld [vmem:[#allocation7 + $0x38] sm:$0xff]
    %v1249 = vld [vmem:[#allocation7 + $0x40] sm:$0xff]
    %v1250 = vld [vmem:[#allocation7 + $0x48] sm:$0xff]
    %v1251 = vld [vmem:[#allocation7 + $0x50] sm:$0xff]
    %v1252 = vld [vmem:[#allocation7 + $0x58] sm:$0xff]
    %v1253 = vld [vmem:[#allocation7 + $0x60] sm:$0xff]
    %v1254 = vld [vmem:[#allocation7 + $0x68] sm:$0xff]
    %v1255 = vld [vmem:[#allocation7 + $0x70] sm:$0xff]
    %v1256 = vld [vmem:[#allocation7 + $0x78] sm:$0xff]
    %v1257 = vld [vmem:[#allocation7 + $0x80] sm:$0xff]
    %v1258 = vld [vmem:[#allocation7 + $0x88] sm:$0xff]
    %v1259 = vld [vmem:[#allocation7 + $0x90] sm:$0xff]
    %v1260 = vld [vmem:[#allocation7 + $0x98] sm:$0xff]
    %v1261 = vld [vmem:[#allocation7 + $0xa0] sm:$0xff]
    %v1262 = vld [vmem:[#allocation7 + $0xa8] sm:$0xff]
    %v1263 = vld [vmem:[#allocation7 + $0xb0] sm:$0xff]
    %v1264 = vld [vmem:[#allocation7 + $0xb8] sm:$0xff]
    %v1265 = vld [vmem:[#allocation7 + $0xc0] sm:$0xff]
    %v1266 = vld [vmem:[#allocation7 + $0xc8] sm:$0xff]
    %v1267 = vld [vmem:[#allocation7 + $0xd0] sm:$0xff]
    %v1268 = vld [vmem:[#allocation7 + $0xd8] sm:$0xff]
    %v1269 = vld [vmem:[#allocation7 + $0xe0] sm:$0xff]
    %v1270 = vld [vmem:[#allocation7 + $0xe8] sm:$0xff]
    %v1271 = vld [vmem:[#allocation7 + $0xf0] sm:$0xff]
    %v1272 = vld [vmem:[#allocation7 + $0xf8] sm:$0xff]
    %v1273 = vld [vmem:[%s4] sm:$0x3]
    %v1275 = vlaneseq
    %v1276 = vshrl.u32 %v1275, 7
    %v1277 = vsub.s32 0, %v1276
    %v1278 = vrot.slane %v1273, %v1277
    %v1279 = vlaneseq
    %v1280 = vshrl.u32 %v1279, 7
    %v1281 = vsub.s32 1, %v1280
    %v1282 = vrot.slane %v1273, %v1281
    %v1317 = vunpack.c.l.b16 %v1241
    %v1318 = vunpack.c.h.b16 %v1241
    %v1319 = vunpack.c.l.b16 %v1242
    %v1320 = vunpack.c.h.b16 %v1242
    %v1321 = vunpack.c.l.b16 %v1243
    %v1322 = vunpack.c.h.b16 %v1243
    %v1323 = vunpack.c.l.b16 %v1244
    %v1324 = vunpack.c.h.b16 %v1244
    %v1325 = vunpack.c.l.b16 %v1245
    %v1326 = vunpack.c.h.b16 %v1245
    %v1327 = vunpack.c.l.b16 %v1246
    %v1328 = vunpack.c.h.b16 %v1246
    %v1329 = vunpack.c.l.b16 %v1247
    %v1330 = vunpack.c.h.b16 %v1247
    %v1331 = vunpack.c.l.b16 %v1248
    %v1332 = vunpack.c.h.b16 %v1248
    %v1333 = vunpack.c.l.b16 %v1249
    %v1334 = vunpack.c.h.b16 %v1249
    %v1335 = vunpack.c.l.b16 %v1250
    %v1336 = vunpack.c.h.b16 %v1250
    %v1337 = vunpack.c.l.b16 %v1251
    %v1338 = vunpack.c.h.b16 %v1251
    %v1339 = vunpack.c.l.b16 %v1252
    %v1340 = vunpack.c.h.b16 %v1252
    %v1341 = vunpack.c.l.b16 %v1253
    %v1342 = vunpack.c.h.b16 %v1253
    %v1343 = vunpack.c.l.b16 %v1254
    %v1344 = vunpack.c.h.b16 %v1254
    %v1345 = vunpack.c.l.b16 %v1255
    %v1346 = vunpack.c.h.b16 %v1255
    %v1347 = vunpack.c.l.b16 %v1256
    %v1348 = vunpack.c.h.b16 %v1256
    %v1349 = vunpack.c.l.b16 %v1257
    %v1350 = vunpack.c.h.b16 %v1257
    %v1351 = vunpack.c.l.b16 %v1258
    %v1352 = vunpack.c.h.b16 %v1258
    %v1353 = vunpack.c.l.b16 %v1259
    %v1354 = vunpack.c.h.b16 %v1259
    %v1355 = vunpack.c.l.b16 %v1260
    %v1356 = vunpack.c.h.b16 %v1260
    %v1357 = vunpack.c.l.b16 %v1261
    %v1358 = vunpack.c.h.b16 %v1261
    %v1359 = vunpack.c.l.b16 %v1262
    %v1360 = vunpack.c.h.b16 %v1262
    %v1361 = vunpack.c.l.b16 %v1263
    %v1362 = vunpack.c.h.b16 %v1263
    %v1363 = vunpack.c.l.b16 %v1264
    %v1364 = vunpack.c.h.b16 %v1264
    %v1365 = vunpack.c.l.b16 %v1265
    %v1366 = vunpack.c.h.b16 %v1265
    %v1367 = vunpack.c.l.b16 %v1266
    %v1368 = vunpack.c.h.b16 %v1266
    %v1369 = vunpack.c.l.b16 %v1267
    %v1370 = vunpack.c.h.b16 %v1267
    %v1371 = vunpack.c.l.b16 %v1268
    %v1372 = vunpack.c.h.b16 %v1268
    %v1373 = vunpack.c.l.b16 %v1269
    %v1374 = vunpack.c.h.b16 %v1269
    %v1375 = vunpack.c.l.b16 %v1270
    %v1376 = vunpack.c.h.b16 %v1270
    %v1377 = vunpack.c.l.b16 %v1271
    %v1378 = vunpack.c.h.b16 %v1271
    %v1379 = vunpack.c.l.b16 %v1272
    %v1380 = vunpack.c.h.b16 %v1272
    %v1381 = vpack.c.b16 %v1319, %v1317
    %v1382 = vpack.c.b16 %v1320, %v1318
    %v1383 = vpack.c.b16 %v1323, %v1321
    %v1384 = vpack.c.b16 %v1324, %v1322
    %v1385 = vpack.c.b16 %v1327, %v1325
    %v1386 = vpack.c.b16 %v1328, %v1326
    %v1387 = vpack.c.b16 %v1331, %v1329
    %v1388 = vpack.c.b16 %v1332, %v1330
    %v1389 = vpack.c.b16 %v1335, %v1333
    %v1390 = vpack.c.b16 %v1336, %v1334
    %v1391 = vpack.c.b16 %v1339, %v1337
    %v1392 = vpack.c.b16 %v1340, %v1338
    %v1393 = vpack.c.b16 %v1343, %v1341
    %v1394 = vpack.c.b16 %v1344, %v1342
    %v1395 = vpack.c.b16 %v1347, %v1345
    %v1396 = vpack.c.b16 %v1348, %v1346
    %v1397 = vpack.c.b16 %v1351, %v1349
    %v1398 = vpack.c.b16 %v1352, %v1350
    %v1399 = vpack.c.b16 %v1355, %v1353
    %v1400 = vpack.c.b16 %v1356, %v1354
    %v1401 = vpack.c.b16 %v1359, %v1357
    %v1402 = vpack.c.b16 %v1360, %v1358
    %v1403 = vpack.c.b16 %v1363, %v1361
    %v1404 = vpack.c.b16 %v1364, %v1362
    %v1405 = vpack.c.b16 %v1367, %v1365
    %v1406 = vpack.c.b16 %v1368, %v1366
    %v1407 = vpack.c.b16 %v1371, %v1369
    %v1408 = vpack.c.b16 %v1372, %v1370
    %v1409 = vpack.c.b16 %v1375, %v1373
    %v1410 = vpack.c.b16 %v1376, %v1374
    %v1411 = vpack.c.b16 %v1379, %v1377
    %v1412 = vpack.c.b16 %v1380, %v1378
    %1445 = vmatprep.subr.bf16.mxu0 %v1382
    %1446 = vmatpush1.bf16.msra.mxu0 %v1381
    %1447 = vmatprep.subr.bf16.mxu0 %v1384
    %1448 = vmatpush1.bf16.msra.mxu0 %v1383
    %1449 = vmatprep.subr.bf16.mxu0 %v1386
    %1450 = vmatpush1.bf16.msra.mxu0 %v1385
    %1451 = vmatprep.subr.bf16.mxu0 %v1388
    %1452 = vmatpush1.bf16.msra.mxu0 %v1387
    %1453 = vmatprep.subr.bf16.mxu0 %v1390
    %1454 = vmatpush1.bf16.msra.mxu0 %v1389
    %1455 = vmatprep.subr.bf16.mxu0 %v1392
    %1456 = vmatpush1.bf16.msra.mxu0 %v1391
    %1457 = vmatprep.subr.bf16.mxu0 %v1394
    %1458 = vmatpush1.bf16.msra.mxu0 %v1393
    %1459 = vmatprep.subr.bf16.mxu0 %v1396
    %1460 = vmatpush1.bf16.msra.mxu0 %v1395
    %1461 = vmatprep.subr.bf16.mxu0 %v1398
    %1462 = vmatpush1.bf16.msra.mxu0 %v1397
    %1463 = vmatprep.subr.bf16.mxu0 %v1400
    %1464 = vmatpush1.bf16.msra.mxu0 %v1399
    %1465 = vmatprep.subr.bf16.mxu0 %v1402
    %1466 = vmatpush1.bf16.msra.mxu0 %v1401
    %1467 = vmatprep.subr.bf16.mxu0 %v1404
    %1468 = vmatpush1.bf16.msra.mxu0 %v1403
    %1469 = vmatprep.subr.bf16.mxu0 %v1406
    %1470 = vmatpush1.bf16.msra.mxu0 %v1405
    %1471 = vmatprep.subr.bf16.mxu0 %v1408
    %1472 = vmatpush1.bf16.msra.mxu0 %v1407
    %1473 = vmatprep.subr.bf16.mxu0 %v1410
    %1474 = vmatpush1.bf16.msra.mxu0 %v1409
    %1475 = vmatprep.subr.bf16.mxu0 %v1412
    %1476 = vmatpush1.bf16.msra.mxu0 %v1411
    %1477 = vmatprep.mubr.bf16.mxu0 %v1240
    %1478 = vmatmul.mubr.bf16.gmra.mrb[0].mxu0 %v1239
    %v1479 = vpop.f32.mrb[0].mxu0
    %v1480 = vadd.f32 %v1278, %v1479
    %v1481 = vpop.f32.mrb[0].mxu0
    %v1482 = vadd.f32 %v1282, %v1481
    %v1483 = vpop.f32.mrb[0].mxu0
    %v1484 = vadd.f32 %v1278, %v1483
    %v1485 = vpop.f32.mrb[0].mxu0
    %v1486 = vadd.f32 %v1282, %v1485
    %1487 = vdwg.mxu0
    %v1488 = vmax.f32 %v1480, 0.0
    %v1489 = vmax.f32 %v1482, 0.0
    %v1490 = vmax.f32 %v1484, 0.0
    %v1491 = vmax.f32 %v1486, 0.0
    %v1492 = vpack.c.bf16 %v1490, %v1488
    %v1493 = vpack.c.bf16 %v1491, %v1489
    %v1494 = vld [vmem:[#allocation8] sm:$0xf]
    %v1495 = vld [vmem:[#allocation8 + $0x4] sm:$0xf]
    %v1496 = vld [vmem:[#allocation8 + $0x8] sm:$0xf]
    %v1497 = vld [vmem:[#allocation8 + $0xc] sm:$0xf]
    %v1498 = vld [vmem:[#allocation8 + $0x10] sm:$0xf]
    %v1499 = vld [vmem:[#allocation8 + $0x14] sm:$0xf]
    %v1500 = vld [vmem:[#allocation8 + $0x18] sm:$0xf]
    %v1501 = vld [vmem:[#allocation8 + $0x1c] sm:$0xf]
    %v1502 = vld [vmem:[#allocation8 + $0x20] sm:$0xf]
    %v1503 = vld [vmem:[#allocation8 + $0x24] sm:$0xf]
    %v1504 = vld [vmem:[#allocation8 + $0x28] sm:$0xf]
    %v1505 = vld [vmem:[#allocation8 + $0x2c] sm:$0xf]
    %v1506 = vld [vmem:[#allocation8 + $0x30] sm:$0xf]
    %v1507 = vld [vmem:[#allocation8 + $0x34] sm:$0xf]
    %v1508 = vld [vmem:[#allocation8 + $0x38] sm:$0xf]
    %v1509 = vld [vmem:[#allocation8 + $0x3c] sm:$0xf]
    %v1510 = vld [vmem:[#allocation8 + $0x40] sm:$0xf]
    %v1511 = vld [vmem:[#allocation8 + $0x44] sm:$0xf]
    %v1512 = vld [vmem:[#allocation8 + $0x48] sm:$0xf]
    %v1513 = vld [vmem:[#allocation8 + $0x4c] sm:$0xf]
    %v1514 = vld [vmem:[#allocation8 + $0x50] sm:$0xf]
    %v1515 = vld [vmem:[#allocation8 + $0x54] sm:$0xf]
    %v1516 = vld [vmem:[#allocation8 + $0x58] sm:$0xf]
    %v1517 = vld [vmem:[#allocation8 + $0x5c] sm:$0xf]
    %v1518 = vld [vmem:[#allocation8 + $0x60] sm:$0xf]
    %v1519 = vld [vmem:[#allocation8 + $0x64] sm:$0xf]
    %v1520 = vld [vmem:[#allocation8 + $0x68] sm:$0xf]
    %v1521 = vld [vmem:[#allocation8 + $0x6c] sm:$0xf]
    %v1522 = vld [vmem:[#allocation8 + $0x70] sm:$0xf]
    %v1523 = vld [vmem:[#allocation8 + $0x74] sm:$0xf]
    %v1524 = vld [vmem:[#allocation8 + $0x78] sm:$0xf]
    %v1525 = vld [vmem:[#allocation8 + $0x7c] sm:$0xf]
    %v1526 = vld [vmem:[%s6] sm:$0x1]
    %v1528 = vlaneseq
    %v1529 = vshrl.u32 %v1528, 7
    %v1530 = vsub.s32 0, %v1529
    %v1531 = vrot.slane %v1526, %v1530
    %v1565 = vunpack.c.l.b16 %v1494
    %v1566 = vunpack.c.l.b16 %v1495
    %v1567 = vunpack.c.l.b16 %v1496
    %v1568 = vunpack.c.l.b16 %v1497
    %v1569 = vunpack.c.l.b16 %v1498
    %v1570 = vunpack.c.l.b16 %v1499
    %v1571 = vunpack.c.l.b16 %v1500
    %v1572 = vunpack.c.l.b16 %v1501
    %v1573 = vunpack.c.l.b16 %v1502
    %v1574 = vunpack.c.l.b16 %v1503
    %v1575 = vunpack.c.l.b16 %v1504
    %v1576 = vunpack.c.l.b16 %v1505
    %v1577 = vunpack.c.l.b16 %v1506
    %v1578 = vunpack.c.l.b16 %v1507
    %v1579 = vunpack.c.l.b16 %v1508
    %v1580 = vunpack.c.l.b16 %v1509
    %v1581 = vunpack.c.l.b16 %v1510
    %v1582 = vunpack.c.l.b16 %v1511
    %v1583 = vunpack.c.l.b16 %v1512
    %v1584 = vunpack.c.l.b16 %v1513
    %v1585 = vunpack.c.l.b16 %v1514
    %v1586 = vunpack.c.l.b16 %v1515
    %v1587 = vunpack.c.l.b16 %v1516
    %v1588 = vunpack.c.l.b16 %v1517
    %v1589 = vunpack.c.l.b16 %v1518
    %v1590 = vunpack.c.l.b16 %v1519
    %v1591 = vunpack.c.l.b16 %v1520
    %v1592 = vunpack.c.l.b16 %v1521
    %v1593 = vunpack.c.l.b16 %v1522
    %v1594 = vunpack.c.l.b16 %v1523
    %v1595 = vunpack.c.l.b16 %v1524
    %v1596 = vunpack.c.l.b16 %v1525
    %v1597 = vpack.c.b16 %v1566, %v1565
    %v1598 = vpack.c.b16 %v1568, %v1567
    %v1599 = vpack.c.b16 %v1570, %v1569
    %v1600 = vpack.c.b16 %v1572, %v1571
    %v1601 = vpack.c.b16 %v1574, %v1573
    %v1602 = vpack.c.b16 %v1576, %v1575
    %v1603 = vpack.c.b16 %v1578, %v1577
    %v1604 = vpack.c.b16 %v1580, %v1579
    %v1605 = vpack.c.b16 %v1582, %v1581
    %v1606 = vpack.c.b16 %v1584, %v1583
    %v1607 = vpack.c.b16 %v1586, %v1585
    %v1608 = vpack.c.b16 %v1588, %v1587
    %v1609 = vpack.c.b16 %v1590, %v1589
    %v1610 = vpack.c.b16 %v1592, %v1591
    %v1611 = vpack.c.b16 %v1594, %v1593
    %v1612 = vpack.c.b16 %v1596, %v1595
    %1629 = vmatprep.subr.bf16.mxu0 0
    %1630 = vmatpush1.bf16.msra.mxu0 %v1597
    %1631 = vmatprep.subr.bf16.mxu0 0
    %1632 = vmatpush1.bf16.msra.mxu0 %v1598
    %1633 = vmatprep.subr.bf16.mxu0 0
    %1634 = vmatpush1.bf16.msra.mxu0 %v1599
    %1635 = vmatprep.subr.bf16.mxu0 0
    %1636 = vmatpush1.bf16.msra.mxu0 %v1600
    %1637 = vmatprep.subr.bf16.mxu0 0
    %1638 = vmatpush1.bf16.msra.mxu0 %v1601
    %1639 = vmatprep.subr.bf16.mxu0 0
    %1640 = vmatpush1.bf16.msra.mxu0 %v1602
    %1641 = vmatprep.subr.bf16.mxu0 0
    %1642 = vmatpush1.bf16.msra.mxu0 %v1603
    %1643 = vmatprep.subr.bf16.mxu0 0
    %1644 = vmatpush1.bf16.msra.mxu0 %v1604
    %1645 = vmatprep.subr.bf16.mxu0 0
    %1646 = vmatpush1.bf16.msra.mxu0 %v1605
    %1647 = vmatprep.subr.bf16.mxu0 0
    %1648 = vmatpush1.bf16.msra.mxu0 %v1606
    %1649 = vmatprep.subr.bf16.mxu0 0
    %1650 = vmatpush1.bf16.msra.mxu0 %v1607
    %1651 = vmatprep.subr.bf16.mxu0 0
    %1652 = vmatpush1.bf16.msra.mxu0 %v1608
    %1653 = vmatprep.subr.bf16.mxu0 0
    %1654 = vmatpush1.bf16.msra.mxu0 %v1609
    %1655 = vmatprep.subr.bf16.mxu0 0
    %1656 = vmatpush1.bf16.msra.mxu0 %v1610
    %1657 = vmatprep.subr.bf16.mxu0 0
    %1658 = vmatpush1.bf16.msra.mxu0 %v1611
    %1659 = vmatprep.subr.bf16.mxu0 0
    %1660 = vmatpush1.bf16.msra.mxu0 %v1612
    %1661 = vmatprep.mubr.bf16.mxu0 %v1493
    %1662 = vmatmul.mubr.bf16.gmra.mrb[0].mxu0 %v1492
    %v1663 = vpop.f32.mrb[0].mxu0
    %v1664 = vadd.f32 %v1531, %v1663
    %v1665 = vpop.f32.mrb[0].mxu0
    %v1666 = vpop.f32.mrb[0].mxu0
    %v1667 = vadd.f32 %v1531, %v1666
    %v1668 = vpop.f32.mrb[0].mxu0
    %1669 = vdwg.mxu0
    %v1670 = vpack.c.bf16 %v1667, %v1664
    %v1672 = vcombine.high %v1670, %v1670
    %v1674 = vunpack.c.l.s4 1966171168
    %v1675 = vunpack.c.0.s8 %v1674
    %v1676 = vlaneseq
    %v1677 = vshrl.u32 %v1676, 7
    %v1678 = vsub.s32 %v1675, %v1677
    %v1679 = vrot.slane %v1670, %v1678
    %v1681 = vunpack.c.l.s4 1966171168
    %v1682 = vunpack.c.0.s8 %v1681
    %v1683 = vlaneseq
    %v1684 = vshrl.u32 %v1683, 7
    %v1685 = vsub.s32 %v1682, %v1684
    %v1686 = vrot.slane %v1672, %v1685
    %v1687 = vcombine.high %v1679, %v1679
    %v1688 = vcombine.high %v1686, %v1686
    %v1690 = vunpack.c.l.s4 1966171168
    %v1691 = vunpack.c.0.s8 %v1690
    %v1692 = vlaneseq
    %v1693 = vshrl.u32 %v1692, 7
    %v1694 = vsub.s32 %v1691, %v1693
    %v1695 = vrot.slane %v1679, %v1694
    %v1697 = vunpack.c.l.s4 1966171168
    %v1698 = vunpack.c.0.s8 %v1697
    %v1699 = vlaneseq
    %v1700 = vshrl.u32 %v1699, 7
    %v1701 = vsub.s32 %v1698, %v1700
    %v1702 = vrot.slane %v1686, %v1701
    %v1704 = vunpack.c.l.s4 1966171168
    %v1705 = vunpack.c.0.s8 %v1704
    %v1706 = vlaneseq
    %v1707 = vshrl.u32 %v1706, 7
    %v1708 = vsub.s32 %v1705, %v1707
    %v1709 = vrot.slane %v1687, %v1708
    %v1711 = vunpack.c.l.s4 1966171168
    %v1712 = vunpack.c.0.s8 %v1711
    %v1713 = vlaneseq
    %v1714 = vshrl.u32 %v1713, 7
    %v1715 = vsub.s32 %v1712, %v1714
    %v1716 = vrot.slane %v1688, %v1715
    %v1717 = vcombine.high %v1695, %v1695
    %v1718 = vcombine.high %v1702, %v1702
    %v1719 = vcombine.high %v1709, %v1709
    %v1720 = vcombine.high %v1716, %v1716
    %1729 = vst [vmem:[#allocation10] sm:$0x1] %v1695
    %1730 = vst [vmem:[#allocation10 + $0x1] sm:$0x1] %v1709
    %1731 = vst [vmem:[#allocation10 + $0x2] sm:$0x1] %v1717
    %1732 = vst [vmem:[#allocation10 + $0x3] sm:$0x1] %v1719
    %1733 = vst [vmem:[#allocation10 + $0x4] sm:$0x1] %v1702
    %1734 = vst [vmem:[#allocation10 + $0x5] sm:$0x1] %v1716
    %1735 = vst [vmem:[#allocation10 + $0x6] sm:$0x1] %v1718
    %1736 = vst [vmem:[#allocation10 + $0x7] sm:$0x1] %v1720
    // Predicated region
    $region46: #{tpu_custom_call.1} parent=1 // pred_check
      _
    $region47: #{tpu_custom_call.1} parent=1 // pred_check_branch
      %1738 = sbr.rel (0) target = $region49
    $region48: #{tpu_custom_call.1} parent=1 // pred_region
      %s1740 = ssub.s32 128, 16
      %1741 = vsyncadd [#allocation4], %s1740
      %s1742 = sshll.u32 [#allocation10], 4
      %s1743 = int_to_ptr.vmem [resolvable:$true] %s1742
      %1748 = dma.vmem_to_hbm [thread:$0]  %s1743, 16, %s7, [#allocation4], 16, 16, 1
    $region49: #{tpu_custom_call.1} parent=1 // pred_fallthru
      _
    // Predicated region
    $region50: #{tpu_custom_call.1} parent=1 // pred_check
      _
    $region51: #{tpu_custom_call.1} parent=1 // pred_check_branch
      %1750 = sbr.rel (0) target = $region53
    $region52: #{tpu_custom_call.1} parent=1 // pred_region
      %1751 = dma.done [#allocation4], 128
    $region53: #{tpu_custom_call.1} parent=1 // pred_fallthru
      _
    %1752 = vsyncpa [#allocation3], 1
    %1753 = vsyncpa [#allocation6], 1
    %1754 = vsyncpa [#allocation9], 1
    %1755 = vsyncpa [#allocation4], 1

</llo_original>
